<compile_context>
chip_gen: v7x
topology: tpu7x:2x2x1
jax: 0.10.0
libtpu: 0.0.40
codegen_flags: <defaults>
</compile_context>

<pallas_src>
import numpy as np
import jax
import jax.numpy as jnp
from jax.experimental import pallas as pl
from jax.experimental.pallas import tpu as pltpu

HIDDEN = 20        # hiddenSize
HP = 32            # lane-aligned padded hidden size (gate stride)
NUM_LAYERS = 2     # numLayers
INPUT_SIZE = 8     # TODO(synk): stand-in for tools.getNumSensors('p')
NUM_CLASSES = 3    # TODO(synk): stand-in for settings.numClasses
CP = 128           # lane-padded decoder output width (unmasked vst); sliced to NUM_CLASSES
SEQ_LEN = 8
BATCH = 1          # module's init_hidden fixes batch dim to 1


def lstm_kernel(x_ref, wih0_ref, whh0_ref, b0_ref,
                w1_ref, b1_ref,
                h0_ref, c0_ref, wdec_ref, bdec_ref,
                y_ref, hn_ref, cn_ref):
    """Fused 2-layer LSTM recurrence + Linear decoder + Sigmoid.

    All weights are pre-transposed / gate-padded to 4*HP = 128 lanes and the
    g-gate columns pre-scaled by 2 (tanh(x) = 2*sigmoid(2x) - 1):
      wih0: (D, 128)   whh0: (HP, 128)   b0: (1, 128)
      w1:   (2*HP, 128) == [wih1; whh1] stacked        b1: (1, 128)
      wdec: (HP, CP)   bdec: (1, CP)
    h/c states are (NUM_LAYERS, HP) with zeros in the padded lanes.  The
    padding invariant holds: padded z lanes are 0 -> i_pad = f_pad = 0.5,
    g_pad = 2*sigmoid(0) - 1 = 0 -> padded c/h lanes stay exactly 0.
    """
    T = x_ref.shape[0]
    f32 = jnp.float32

    # Hoisted layer-0 input projection + combined bias for the whole sequence.
    zx0 = (jnp.dot(x_ref[...], wih0_ref[...], preferred_element_type=f32)
           + b0_ref[...])                                        # (T, 128)
    # Hoist per-step row extracts off the per-step MXU->EUP critical chain.
    zx0_rows = [zx0[t:t + 1, :] for t in range(T)]

    whh0 = whh0_ref[...]
    w1 = w1_ref[...]
    b1 = b1_ref[...]

    def cell(z, c):
        # One sigmoid EUP pass covers i, f, o AND g (g-gate pre-scaled by 2).
        sig = jax.nn.sigmoid(z)
        i = sig[:, 0 * HP:1 * HP]
        f = sig[:, 1 * HP:2 * HP]
        g = 2.0 * sig[:, 2 * HP:3 * HP] - 1.0       # == tanh(z_g)
        o = sig[:, 3 * HP:4 * HP]
        c_new = f * c + i * g
        h_new = o * jnp.tanh(c_new)
        return h_new, c_new

    h0 = h0_ref[0:1, :]
    c0 = c0_ref[0:1, :]
    h1 = h0_ref[1:2, :]
    c1 = c0_ref[1:2, :]

    # Layer-1 outputs stay in vregs: assemble (T, HP) with broadcast + select
    # (no VMEM scratch, no masked sub-tile stores).
    row_t = jax.lax.broadcasted_iota(jnp.int32, (T, HP), 0)
    h1seq = jnp.zeros((T, HP), f32)

    # Fused two-layer recurrence; T is static and tiny -> full unroll gives the
    # scheduler cross-step visibility with no loop/branch overhead.
    for t in range(T):
        # layer 0: single recurrent matmul per step
        z0 = zx0_rows[t] + jnp.dot(h0, whh0, preferred_element_type=f32)
        h0, c0 = cell(z0, c0)
        # layer 1 (inter-layer dropout = 0 -> no-op): single stacked matmul
        lhs1 = jnp.concatenate([h0, h1], axis=1)                 # (1, 2*HP)
        z1 = jnp.dot(lhs1, w1, preferred_element_type=f32) + b1
        h1, c1 = cell(z1, c1)
        h1seq = jnp.where(row_t == t, jnp.broadcast_to(h1, (T, HP)), h1seq)

    # Coalesced epilogue state stores: one (2, HP) store for hn and one for cn.
    row_l = jax.lax.broadcasted_iota(jnp.int32, (NUM_LAYERS, HP), 0)
    hn_ref[...] = jnp.where(row_l == 0,
                            jnp.broadcast_to(h0, (NUM_LAYERS, HP)),
                            jnp.broadcast_to(h1, (NUM_LAYERS, HP)))
    cn_ref[...] = jnp.where(row_l == 0,
                            jnp.broadcast_to(c0, (NUM_LAYERS, HP)),
                            jnp.broadcast_to(c1, (NUM_LAYERS, HP)))

    # Decoder (Linear) + Sigmoid over the whole sequence: one matmul, one
    # lane-dense (T, CP) store (padded columns hold sigmoid(0)=0.5 and are
    # sliced away in the wrapper).
    logits = (jnp.dot(h1seq, wdec_ref[...], preferred_element_type=f32)
              + bdec_ref[...])
    y_ref[...] = jax.nn.sigmoid(logits)


def prepare_params(params):
    """One-time host-side weight prep (padding, stacking, g-gate pre-scaling)."""
    (wih0, whh0, bih0, bhh0,
     wih1, whh1, bih1, bhh1,
     wdec, bdec) = [np.asarray(p, np.float32) for p in params]

    def pad_gate_cols(w_t):
        # (in_dim, 4*HIDDEN) -> (in_dim, 4*HP); gate g at lane offset g*HP.
        out = np.zeros((w_t.shape[0], 4 * HP), np.float32)
        for g in range(4):
            out[:, g * HP:g * HP + HIDDEN] = w_t[:, g * HIDDEN:(g + 1) * HIDDEN]
        return out

    def pad_rows(w, rows):
        out = np.zeros((rows, w.shape[1]), np.float32)
        out[:w.shape[0], :] = w
        return out

    def scale_g(w):
        # Pre-scale the g-gate block by 2 so tanh(x) == 2*sigmoid(2x) - 1 in-kernel.
        w = w.copy()
        w[:, 2 * HP:3 * HP] *= 2.0
        return w

    wih0_p = scale_g(pad_gate_cols(wih0.T))                        # (D, 128)
    whh0_p = scale_g(pad_rows(pad_gate_cols(whh0.T), HP))          # (HP, 128)
    b0_p = scale_g(pad_gate_cols((bih0 + bhh0)[None, :]))          # (1, 128)

    wih1_p = scale_g(pad_rows(pad_gate_cols(wih1.T), HP))          # (HP, 128)
    whh1_p = scale_g(pad_rows(pad_gate_cols(whh1.T), HP))          # (HP, 128)
    w1_p = np.concatenate([wih1_p, whh1_p], axis=0)                # (2*HP, 128)
    b1_p = scale_g(pad_gate_cols((bih1 + bhh1)[None, :]))          # (1, 128)

    wdec_p = np.zeros((HP, CP), np.float32)
    wdec_p[:HIDDEN, :NUM_CLASSES] = wdec.T
    bdec_p = np.zeros((1, CP), np.float32)
    bdec_p[0, :NUM_CLASSES] = bdec

    return tuple(jnp.asarray(a) for a in
                 (wih0_p, whh0_p, b0_p, w1_p, b1_p, wdec_p, bdec_p))


@jax.jit
def single_lstm_forward(x, prepared, hidden):
    """x: (T, 1, INPUT_SIZE) float32. Returns (y (T,1,C), (h_n, c_n))."""
    wih0_p, whh0_p, b0_p, w1_p, b1_p, wdec_p, bdec_p = prepared
    h0, c0 = hidden
    T = x.shape[0]
    f32 = jnp.float32

    x2 = x.reshape(T, INPUT_SIZE).astype(f32)

    def pad_state(s):
        return jnp.pad(s.reshape(NUM_LAYERS, HIDDEN).astype(f32),
                       ((0, 0), (0, HP - HIDDEN)))

    h0_p, c0_p = pad_state(h0), pad_state(c0)

    vmem = pl.BlockSpec(memory_space=pltpu.MemorySpace.VMEM)
    args = (x2, wih0_p, whh0_p, b0_p, w1_p, b1_p, h0_p, c0_p, wdec_p, bdec_p)
    out_shapes = (
        jax.ShapeDtypeStruct((T, CP), f32),
        jax.ShapeDtypeStruct((NUM_LAYERS, HP), f32),
        jax.ShapeDtypeStruct((NUM_LAYERS, HP), f32),
    )
    y_p, hn_p, cn_p = pl.pallas_call(
        lstm_kernel,
        out_shape=out_shapes,
        in_specs=[vmem] * len(args),
        out_specs=(vmem, vmem, vmem),
    )(*args)

    y = y_p[:, :NUM_CLASSES].reshape(T, BATCH, NUM_CLASSES)
    hn = hn_p[:, :HIDDEN].reshape(NUM_LAYERS, BATCH, HIDDEN)
    cn = cn_p[:, :HIDDEN].reshape(NUM_LAYERS, BATCH, HIDDEN)
    return y, (hn, cn)


def init_params(key):
    """Deterministic stand-in for PyTorch's default LSTM/Linear init, plus the
    forget-gate bias fill(1.0) done in SingleLSTM.__init__."""
    k = 1.0 / float(np.sqrt(HIDDEN))
    keys = jax.random.split(key, 10)

    def u(kk, shape):
        return jax.random.uniform(kk, shape, jnp.float32, -k, k)

    wih0 = u(keys[0], (4 * HIDDEN, INPUT_SIZE))
    whh0 = u(keys[1], (4 * HIDDEN, HIDDEN))
    bih0 = u(keys[2], (4 * HIDDEN,))
    bhh0 = u(keys[3], (4 * HIDDEN,))
    wih1 = u(keys[4], (4 * HIDDEN, HIDDEN))
    whh1 = u(keys[5], (4 * HIDDEN, HIDDEN))
    bih1 = u(keys[6], (4 * HIDDEN,))
    bhh1 = u(keys[7], (4 * HIDDEN,))

    # bias.data[n//4 : n//2].fill_(1.0)  -> forget-gate bias = 1.0 on every bias
    fg = slice(HIDDEN, 2 * HIDDEN)
    bih0 = bih0.at[fg].set(1.0)
    bhh0 = bhh0.at[fg].set(1.0)
    bih1 = bih1.at[fg].set(1.0)
    bhh1 = bhh1.at[fg].set(1.0)

    wdec = u(keys[8], (NUM_CLASSES, HIDDEN))
    bdec = u(keys[9], (NUM_CLASSES,))
    return (wih0, whh0, bih0, bhh0, wih1, whh1, bih1, bhh1, wdec, bdec)


def reference_forward(x, params, hidden):
    """Pure-JAX reference implementing the same PyTorch LSTM semantics."""
    (wih0, whh0, bih0, bhh0, wih1, whh1, bih1, bhh1, wdec, bdec) = params
    h0, c0 = hidden
    T, H = x.shape[0], HIDDEN

    def cell(x_t, h, c, wih, whh, bih, bhh):
        z = x_t @ wih.T + h @ whh.T + bih + bhh
        i = jax.nn.sigmoid(z[..., 0 * H:1 * H])
        f = jax.nn.sigmoid(z[..., 1 * H:2 * H])
        g = jnp.tanh(z[..., 2 * H:3 * H])
        o = jax.nn.sigmoid(z[..., 3 * H:4 * H])
        c = f * c + i * g
        h = o * jnp.tanh(c)
        return h, c

    h = [h0[0], h0[1]]
    c = [c0[0], c0[1]]
    ys = []
    for t in range(T):
        h[0], c[0] = cell(x[t], h[0], c[0], wih0, whh0, bih0, bhh0)
        h[1], c[1] = cell(h[0], h[1], c[1], wih1, whh1, bih1, bhh1)
        ys.append(h[1])
    out = jnp.stack(ys, axis=0)                     # (T, 1, H)
    y = jax.nn.sigmoid(out @ wdec.T + bdec)         # (T, 1, C)
    return y, (jnp.stack(h, axis=0), jnp.stack(c, axis=0))


if __name__ == "__main__":
    key = jax.random.PRNGKey(0)
    kp, kh, kc, kx = jax.random.split(key, 4)

    params = init_params(kp)
    prepared = prepare_params(params)   # one-time host-side padding/stacking

    # self.hidden = (randn(numLayers, 1, hiddenSize), randn(numLayers, 1, hiddenSize))
    h0 = jax.random.normal(kh, (NUM_LAYERS, BATCH, HIDDEN), jnp.float32)
    c0 = jax.random.normal(kc, (NUM_LAYERS, BATCH, HIDDEN), jnp.float32)
    x = jax.random.normal(kx, (SEQ_LEN, BATCH, INPUT_SIZE), jnp.float32)

    y, (hn, cn) = single_lstm_forward(x, prepared, (h0, c0))
    jax.block_until_ready(y)

    y_ref, (hn_ref, cn_ref) = reference_forward(x, params, (h0, c0))
    # Tolerance documents MXU default-precision matmuls and the stacked-weight /
    # 2*sigmoid(2x)-1 reformulation (different summation order than reference).
    np.testing.assert_allclose(np.asarray(y), np.asarray(y_ref), atol=1e-4, rtol=1e-4)
    np.testing.assert_allclose(np.asarray(hn), np.asarray(hn_ref), atol=1e-4, rtol=1e-4)
    np.testing.assert_allclose(np.asarray(cn), np.asarray(cn_ref), atol=1e-4, rtol=1e-4)

    # TODO(synk): training-side pieces (BCELoss, Adam, classify thresholding,
    # interactive model naming) are not part of forward and are omitted.
    print("KERNEL_OK")
</pallas_src>

<mosaic_0001>
module attributes {stable_mosaic.version = 11 : i64} {
  func.func @lstm_kernel(%arg0: memref<8x8xf32, #tpu.memory_space<vmem>>, %arg1: memref<8x128xf32, #tpu.memory_space<vmem>>, %arg2: memref<32x128xf32, #tpu.memory_space<vmem>>, %arg3: memref<1x128xf32, #tpu.memory_space<vmem>>, %arg4: memref<64x128xf32, #tpu.memory_space<vmem>>, %arg5: memref<1x128xf32, #tpu.memory_space<vmem>>, %arg6: memref<2x32xf32, #tpu.memory_space<vmem>>, %arg7: memref<2x32xf32, #tpu.memory_space<vmem>>, %arg8: memref<32x128xf32, #tpu.memory_space<vmem>>, %arg9: memref<1x128xf32, #tpu.memory_space<vmem>>, %arg10: memref<8x128xf32, #tpu.memory_space<vmem>>, %arg11: memref<2x32xf32, #tpu.memory_space<vmem>>, %arg12: memref<2x32xf32, #tpu.memory_space<vmem>>) attributes {dimension_semantics = [], scalar_prefetch = 0 : i64, scratch_operands = 0 : i64, tpu.core_type = #tpu.core_type<tc>} {
    %c0 = arith.constant 0 : index
    %c0_0 = arith.constant 0 : index
    %0 = vector.load %arg0[%c0, %c0_0] : memref<8x8xf32, #tpu.memory_space<vmem>>, vector<8x8xf32>
    %c0_1 = arith.constant 0 : index
    %c0_2 = arith.constant 0 : index
    %1 = vector.load %arg1[%c0_1, %c0_2] : memref<8x128xf32, #tpu.memory_space<vmem>>, vector<8x128xf32>
    %cst = arith.constant dense<0.000000e+00> : vector<8x128xf32>
    %2 = tpu.matmul %0, %1, %cst {dimension_numbers = #tpu.dot_dimension_numbers<[1], [0], [0], [1], [0, 0, 1, 1], [], []>} : vector<8x8xf32>, vector<8x128xf32>, vector<8x128xf32> -> vector<8x128xf32>
    %c0_3 = arith.constant 0 : index
    %c0_4 = arith.constant 0 : index
    %3 = vector.load %arg3[%c0_3, %c0_4] : memref<1x128xf32, #tpu.memory_space<vmem>>, vector<1x128xf32>
    %4 = vector.broadcast %3 : vector<1x128xf32> to vector<8x128xf32>
    %5 = arith.addf %2, %4 : vector<8x128xf32>
    %6 = vector.extract_strided_slice %5 {offsets = [0, 0], sizes = [1, 128], strides = [1, 1]} : vector<8x128xf32> to vector<1x128xf32>
    %7 = vector.extract_strided_slice %5 {offsets = [1, 0], sizes = [1, 128], strides = [1, 1]} : vector<8x128xf32> to vector<1x128xf32>
    %8 = vector.extract_strided_slice %5 {offsets = [2, 0], sizes = [1, 128], strides = [1, 1]} : vector<8x128xf32> to vector<1x128xf32>
    %9 = vector.extract_strided_slice %5 {offsets = [3, 0], sizes = [1, 128], strides = [1, 1]} : vector<8x128xf32> to vector<1x128xf32>
    %10 = vector.extract_strided_slice %5 {offsets = [4, 0], sizes = [1, 128], strides = [1, 1]} : vector<8x128xf32> to vector<1x128xf32>
    %11 = vector.extract_strided_slice %5 {offsets = [5, 0], sizes = [1, 128], strides = [1, 1]} : vector<8x128xf32> to vector<1x128xf32>
    %12 = vector.extract_strided_slice %5 {offsets = [6, 0], sizes = [1, 128], strides = [1, 1]} : vector<8x128xf32> to vector<1x128xf32>
    %13 = vector.extract_strided_slice %5 {offsets = [7, 0], sizes = [1, 128], strides = [1, 1]} : vector<8x128xf32> to vector<1x128xf32>
    %c0_5 = arith.constant 0 : index
    %c0_6 = arith.constant 0 : index
    %14 = vector.load %arg2[%c0_5, %c0_6] : memref<32x128xf32, #tpu.memory_space<vmem>>, vector<32x128xf32>
    %c0_7 = arith.constant 0 : index
    %c0_8 = arith.constant 0 : index
    %15 = vector.load %arg4[%c0_7, %c0_8] : memref<64x128xf32, #tpu.memory_space<vmem>>, vector<64x128xf32>
    %c0_9 = arith.constant 0 : index
    %c0_10 = arith.constant 0 : index
    %16 = vector.load %arg5[%c0_9, %c0_10] : memref<1x128xf32, #tpu.memory_space<vmem>>, vector<1x128xf32>
    %c0_11 = arith.constant 0 : index
    %c0_12 = arith.constant 0 : index
    %17 = vector.load %arg6[%c0_11, %c0_12] : memref<2x32xf32, #tpu.memory_space<vmem>>, vector<1x32xf32>
    %c0_13 = arith.constant 0 : index
    %c0_14 = arith.constant 0 : index
    %18 = vector.load %arg7[%c0_13, %c0_14] : memref<2x32xf32, #tpu.memory_space<vmem>>, vector<1x32xf32>
    %c1 = arith.constant 1 : index
    %c0_15 = arith.constant 0 : index
    %19 = vector.load %arg6[%c1, %c0_15] : memref<2x32xf32, #tpu.memory_space<vmem>>, vector<1x32xf32>
    %c1_16 = arith.constant 1 : index
    %c0_17 = arith.constant 0 : index
    %20 = vector.load %arg7[%c1_16, %c0_17] : memref<2x32xf32, #tpu.memory_space<vmem>>, vector<1x32xf32>
    %21 = tpu.iota {dimensions = array<i32: 0>} : vector<8x32xi32>
    %cst_18 = arith.constant 0.000000e+00 : f32
    %22 = vector.broadcast %cst_18 : f32 to vector<8x32xf32>
    %cst_19 = arith.constant dense<0.000000e+00> : vector<1x128xf32>
    %23 = tpu.matmul %17, %14, %cst_19 {dimension_numbers = #tpu.dot_dimension_numbers<[1], [0], [0], [1], [0, 0, 1, 1], [], []>} : vector<1x32xf32>, vector<32x128xf32>, vector<1x128xf32> -> vector<1x128xf32>
    %24 = arith.addf %6, %23 : vector<1x128xf32>
    %25 = arith.negf %24 : vector<1x128xf32>
    %26 = math.exp %25 : vector<1x128xf32>
    %cst_20 = arith.constant 1.000000e+00 : f32
    %27 = vector.broadcast %cst_20 : f32 to vector<1x128xf32>
    %28 = arith.addf %27, %26 : vector<1x128xf32>
    %29 = arith.divf %27, %28 : vector<1x128xf32>
    %30 = vector.extract_strided_slice %29 {offsets = [0, 0], sizes = [1, 32], strides = [1, 1]} : vector<1x128xf32> to vector<1x32xf32>
    %31 = vector.extract_strided_slice %29 {offsets = [0, 32], sizes = [1, 32], strides = [1, 1]} : vector<1x128xf32> to vector<1x32xf32>
    %32 = vector.extract_strided_slice %29 {offsets = [0, 64], sizes = [1, 32], strides = [1, 1]} : vector<1x128xf32> to vector<1x32xf32>
    %cst_21 = arith.constant 2.000000e+00 : f32
    %33 = vector.broadcast %cst_21 : f32 to vector<1x32xf32>
    %34 = arith.mulf %33, %32 : vector<1x32xf32>
    %cst_22 = arith.constant 1.000000e+00 : f32
    %35 = vector.broadcast %cst_22 : f32 to vector<1x32xf32>
    %36 = arith.subf %34, %35 : vector<1x32xf32>
    %37 = vector.extract_strided_slice %29 {offsets = [0, 96], sizes = [1, 32], strides = [1, 1]} : vector<1x128xf32> to vector<1x32xf32>
    %38 = arith.mulf %31, %18 : vector<1x32xf32>
    %39 = arith.mulf %30, %36 : vector<1x32xf32>
    %40 = arith.addf %38, %39 : vector<1x32xf32>
    %41 = math.tanh %40 : vector<1x32xf32>
    %42 = arith.mulf %37, %41 : vector<1x32xf32>
    %43 = tpu.concatenate %42, %19 in 1 : vector<1x32xf32>, vector<1x32xf32> -> vector<1x64xf32>
    %cst_23 = arith.constant dense<0.000000e+00> : vector<1x128xf32>
    %44 = tpu.matmul %43, %15, %cst_23 {dimension_numbers = #tpu.dot_dimension_numbers<[1], [0], [0], [1], [0, 0, 1, 1], [], []>} : vector<1x64xf32>, vector<64x128xf32>, vector<1x128xf32> -> vector<1x128xf32>
    %45 = arith.addf %44, %16 : vector<1x128xf32>
    %46 = arith.negf %45 : vector<1x128xf32>
    %47 = math.exp %46 : vector<1x128xf32>
    %cst_24 = arith.constant 1.000000e+00 : f32
    %48 = vector.broadcast %cst_24 : f32 to vector<1x128xf32>
    %49 = arith.addf %48, %47 : vector<1x128xf32>
    %50 = arith.divf %48, %49 : vector<1x128xf32>
    %51 = vector.extract_strided_slice %50 {offsets = [0, 0], sizes = [1, 32], strides = [1, 1]} : vector<1x128xf32> to vector<1x32xf32>
    %52 = vector.extract_strided_slice %50 {offsets = [0, 32], sizes = [1, 32], strides = [1, 1]} : vector<1x128xf32> to vector<1x32xf32>
    %53 = vector.extract_strided_slice %50 {offsets = [0, 64], sizes = [1, 32], strides = [1, 1]} : vector<1x128xf32> to vector<1x32xf32>
    %cst_25 = arith.constant 2.000000e+00 : f32
    %54 = vector.broadcast %cst_25 : f32 to vector<1x32xf32>
    %55 = arith.mulf %54, %53 : vector<1x32xf32>
    %cst_26 = arith.constant 1.000000e+00 : f32
    %56 = vector.broadcast %cst_26 : f32 to vector<1x32xf32>
    %57 = arith.subf %55, %56 : vector<1x32xf32>
    %58 = vector.extract_strided_slice %50 {offsets = [0, 96], sizes = [1, 32], strides = [1, 1]} : vector<1x128xf32> to vector<1x32xf32>
    %59 = arith.mulf %52, %20 : vector<1x32xf32>
    %60 = arith.mulf %51, %57 : vector<1x32xf32>
    %61 = arith.addf %59, %60 : vector<1x32xf32>
    %62 = math.tanh %61 : vector<1x32xf32>
    %63 = arith.mulf %58, %62 : vector<1x32xf32>
    %c0_i32 = arith.constant 0 : i32
    %64 = vector.broadcast %c0_i32 : i32 to vector<8x32xi32>
    %65 = arith.cmpi eq, %21, %64 : vector<8x32xi32>
    %66 = vector.shape_cast %63 : vector<1x32xf32> to vector<1x32xf32>
    %67 = vector.broadcast %66 : vector<1x32xf32> to vector<8x32xf32>
    %68 = arith.select %65, %67, %22 : vector<8x32xi1>, vector<8x32xf32>
    %cst_27 = arith.constant dense<0.000000e+00> : vector<1x128xf32>
    %69 = tpu.matmul %42, %14, %cst_27 {dimension_numbers = #tpu.dot_dimension_numbers<[1], [0], [0], [1], [0, 0, 1, 1], [], []>} : vector<1x32xf32>, vector<32x128xf32>, vector<1x128xf32> -> vector<1x128xf32>
    %70 = arith.addf %7, %69 : vector<1x128xf32>
    %71 = arith.negf %70 : vector<1x128xf32>
    %72 = math.exp %71 : vector<1x128xf32>
    %cst_28 = arith.constant 1.000000e+00 : f32
    %73 = vector.broadcast %cst_28 : f32 to vector<1x128xf32>
    %74 = arith.addf %73, %72 : vector<1x128xf32>
    %75 = arith.divf %73, %74 : vector<1x128xf32>
    %76 = vector.extract_strided_slice %75 {offsets = [0, 0], sizes = [1, 32], strides = [1, 1]} : vector<1x128xf32> to vector<1x32xf32>
    %77 = vector.extract_strided_slice %75 {offsets = [0, 32], sizes = [1, 32], strides = [1, 1]} : vector<1x128xf32> to vector<1x32xf32>
    %78 = vector.extract_strided_slice %75 {offsets = [0, 64], sizes = [1, 32], strides = [1, 1]} : vector<1x128xf32> to vector<1x32xf32>
    %cst_29 = arith.constant 2.000000e+00 : f32
    %79 = vector.broadcast %cst_29 : f32 to vector<1x32xf32>
    %80 = arith.mulf %79, %78 : vector<1x32xf32>
    %cst_30 = arith.constant 1.000000e+00 : f32
    %81 = vector.broadcast %cst_30 : f32 to vector<1x32xf32>
    %82 = arith.subf %80, %81 : vector<1x32xf32>
    %83 = vector.extract_strided_slice %75 {offsets = [0, 96], sizes = [1, 32], strides = [1, 1]} : vector<1x128xf32> to vector<1x32xf32>
    %84 = arith.mulf %77, %40 : vector<1x32xf32>
    %85 = arith.mulf %76, %82 : vector<1x32xf32>
    %86 = arith.addf %84, %85 : vector<1x32xf32>
    %87 = math.tanh %86 : vector<1x32xf32>
    %88 = arith.mulf %83, %87 : vector<1x32xf32>
    %89 = tpu.concatenate %88, %63 in 1 : vector<1x32xf32>, vector<1x32xf32> -> vector<1x64xf32>
    %cst_31 = arith.constant dense<0.000000e+00> : vector<1x128xf32>
    %90 = tpu.matmul %89, %15, %cst_31 {dimension_numbers = #tpu.dot_dimension_numbers<[1], [0], [0], [1], [0, 0, 1, 1], [], []>} : vector<1x64xf32>, vector<64x128xf32>, vector<1x128xf32> -> vector<1x128xf32>
    %91 = arith.addf %90, %16 : vector<1x128xf32>
    %92 = arith.negf %91 : vector<1x128xf32>
    %93 = math.exp %92 : vector<1x128xf32>
    %cst_32 = arith.constant 1.000000e+00 : f32
    %94 = vector.broadcast %cst_32 : f32 to vector<1x128xf32>
    %95 = arith.addf %94, %93 : vector<1x128xf32>
    %96 = arith.divf %94, %95 : vector<1x128xf32>
    %97 = vector.extract_strided_slice %96 {offsets = [0, 0], sizes = [1, 32], strides = [1, 1]} : vector<1x128xf32> to vector<1x32xf32>
    %98 = vector.extract_strided_slice %96 {offsets = [0, 32], sizes = [1, 32], strides = [1, 1]} : vector<1x128xf32> to vector<1x32xf32>
    %99 = vector.extract_strided_slice %96 {offsets = [0, 64], sizes = [1, 32], strides = [1, 1]} : vector<1x128xf32> to vector<1x32xf32>
    %cst_33 = arith.constant 2.000000e+00 : f32
    %100 = vector.broadcast %cst_33 : f32 to vector<1x32xf32>
    %101 = arith.mulf %100, %99 : vector<1x32xf32>
    %cst_34 = arith.constant 1.000000e+00 : f32
    %102 = vector.broadcast %cst_34 : f32 to vector<1x32xf32>
    %103 = arith.subf %101, %102 : vector<1x32xf32>
    %104 = vector.extract_strided_slice %96 {offsets = [0, 96], sizes = [1, 32], strides = [1, 1]} : vector<1x128xf32> to vector<1x32xf32>
    %105 = arith.mulf %98, %61 : vector<1x32xf32>
    %106 = arith.mulf %97, %103 : vector<1x32xf32>
    %107 = arith.addf %105, %106 : vector<1x32xf32>
    %108 = math.tanh %107 : vector<1x32xf32>
    %109 = arith.mulf %104, %108 : vector<1x32xf32>
    %c1_i32 = arith.constant 1 : i32
    %110 = vector.broadcast %c1_i32 : i32 to vector<8x32xi32>
    %111 = arith.cmpi eq, %21, %110 : vector<8x32xi32>
    %112 = vector.shape_cast %109 : vector<1x32xf32> to vector<1x32xf32>
    %113 = vector.broadcast %112 : vector<1x32xf32> to vector<8x32xf32>
    %114 = arith.select %111, %113, %68 : vector<8x32xi1>, vector<8x32xf32>
    %cst_35 = arith.constant dense<0.000000e+00> : vector<1x128xf32>
    %115 = tpu.matmul %88, %14, %cst_35 {dimension_numbers = #tpu.dot_dimension_numbers<[1], [0], [0], [1], [0, 0, 1, 1], [], []>} : vector<1x32xf32>, vector<32x128xf32>, vector<1x128xf32> -> vector<1x128xf32>
    %116 = arith.addf %8, %115 : vector<1x128xf32>
    %117 = arith.negf %116 : vector<1x128xf32>
    %118 = math.exp %117 : vector<1x128xf32>
    %cst_36 = arith.constant 1.000000e+00 : f32
    %119 = vector.broadcast %cst_36 : f32 to vector<1x128xf32>
    %120 = arith.addf %119, %118 : vector<1x128xf32>
    %121 = arith.divf %119, %120 : vector<1x128xf32>
    %122 = vector.extract_strided_slice %121 {offsets = [0, 0], sizes = [1, 32], strides = [1, 1]} : vector<1x128xf32> to vector<1x32xf32>
    %123 = vector.extract_strided_slice %121 {offsets = [0, 32], sizes = [1, 32], strides = [1, 1]} : vector<1x128xf32> to vector<1x32xf32>
    %124 = vector.extract_strided_slice %121 {offsets = [0, 64], sizes = [1, 32], strides = [1, 1]} : vector<1x128xf32> to vector<1x32xf32>
    %cst_37 = arith.constant 2.000000e+00 : f32
    %125 = vector.broadcast %cst_37 : f32 to vector<1x32xf32>
    %126 = arith.mulf %125, %124 : vector<1x32xf32>
    %cst_38 = arith.constant 1.000000e+00 : f32
    %127 = vector.broadcast %cst_38 : f32 to vector<1x32xf32>
    %128 = arith.subf %126, %127 : vector<1x32xf32>
    %129 = vector.extract_strided_slice %121 {offsets = [0, 96], sizes = [1, 32], strides = [1, 1]} : vector<1x128xf32> to vector<1x32xf32>
    %130 = arith.mulf %123, %86 : vector<1x32xf32>
    %131 = arith.mulf %122, %128 : vector<1x32xf32>
    %132 = arith.addf %130, %131 : vector<1x32xf32>
    %133 = math.tanh %132 : vector<1x32xf32>
    %134 = arith.mulf %129, %133 : vector<1x32xf32>
    %135 = tpu.concatenate %134, %109 in 1 : vector<1x32xf32>, vector<1x32xf32> -> vector<1x64xf32>
    %cst_39 = arith.constant dense<0.000000e+00> : vector<1x128xf32>
    %136 = tpu.matmul %135, %15, %cst_39 {dimension_numbers = #tpu.dot_dimension_numbers<[1], [0], [0], [1], [0, 0, 1, 1], [], []>} : vector<1x64xf32>, vector<64x128xf32>, vector<1x128xf32> -> vector<1x128xf32>
    %137 = arith.addf %136, %16 : vector<1x128xf32>
    %138 = arith.negf %137 : vector<1x128xf32>
    %139 = math.exp %138 : vector<1x128xf32>
    %cst_40 = arith.constant 1.000000e+00 : f32
    %140 = vector.broadcast %cst_40 : f32 to vector<1x128xf32>
    %141 = arith.addf %140, %139 : vector<1x128xf32>
    %142 = arith.divf %140, %141 : vector<1x128xf32>
    %143 = vector.extract_strided_slice %142 {offsets = [0, 0], sizes = [1, 32], strides = [1, 1]} : vector<1x128xf32> to vector<1x32xf32>
    %144 = vector.extract_strided_slice %142 {offsets = [0, 32], sizes = [1, 32], strides = [1, 1]} : vector<1x128xf32> to vector<1x32xf32>
    %145 = vector.extract_strided_slice %142 {offsets = [0, 64], sizes = [1, 32], strides = [1, 1]} : vector<1x128xf32> to vector<1x32xf32>
    %cst_41 = arith.constant 2.000000e+00 : f32
    %146 = vector.broadcast %cst_41 : f32 to vector<1x32xf32>
    %147 = arith.mulf %146, %145 : vector<1x32xf32>
    %cst_42 = arith.constant 1.000000e+00 : f32
    %148 = vector.broadcast %cst_42 : f32 to vector<1x32xf32>
    %149 = arith.subf %147, %148 : vector<1x32xf32>
    %150 = vector.extract_strided_slice %142 {offsets = [0, 96], sizes = [1, 32], strides = [1, 1]} : vector<1x128xf32> to vector<1x32xf32>
    %151 = arith.mulf %144, %107 : vector<1x32xf32>
    %152 = arith.mulf %143, %149 : vector<1x32xf32>
    %153 = arith.addf %151, %152 : vector<1x32xf32>
    %154 = math.tanh %153 : vector<1x32xf32>
    %155 = arith.mulf %150, %154 : vector<1x32xf32>
    %c2_i32 = arith.constant 2 : i32
    %156 = vector.broadcast %c2_i32 : i32 to vector<8x32xi32>
    %157 = arith.cmpi eq, %21, %156 : vector<8x32xi32>
    %158 = vector.shape_cast %155 : vector<1x32xf32> to vector<1x32xf32>
    %159 = vector.broadcast %158 : vector<1x32xf32> to vector<8x32xf32>
    %160 = arith.select %157, %159, %114 : vector<8x32xi1>, vector<8x32xf32>
    %cst_43 = arith.constant dense<0.000000e+00> : vector<1x128xf32>
    %161 = tpu.matmul %134, %14, %cst_43 {dimension_numbers = #tpu.dot_dimension_numbers<[1], [0], [0], [1], [0, 0, 1, 1], [], []>} : vector<1x32xf32>, vector<32x128xf32>, vector<1x128xf32> -> vector<1x128xf32>
    %162 = arith.addf %9, %161 : vector<1x128xf32>
    %163 = arith.negf %162 : vector<1x128xf32>
    %164 = math.exp %163 : vector<1x128xf32>
    %cst_44 = arith.constant 1.000000e+00 : f32
    %165 = vector.broadcast %cst_44 : f32 to vector<1x128xf32>
    %166 = arith.addf %165, %164 : vector<1x128xf32>
    %167 = arith.divf %165, %166 : vector<1x128xf32>
    %168 = vector.extract_strided_slice %167 {offsets = [0, 0], sizes = [1, 32], strides = [1, 1]} : vector<1x128xf32> to vector<1x32xf32>
    %169 = vector.extract_strided_slice %167 {offsets = [0, 32], sizes = [1, 32], strides = [1, 1]} : vector<1x128xf32> to vector<1x32xf32>
    %170 = vector.extract_strided_slice %167 {offsets = [0, 64], sizes = [1, 32], strides = [1, 1]} : vector<1x128xf32> to vector<1x32xf32>
    %cst_45 = arith.constant 2.000000e+00 : f32
    %171 = vector.broadcast %cst_45 : f32 to vector<1x32xf32>
    %172 = arith.mulf %171, %170 : vector<1x32xf32>
    %cst_46 = arith.constant 1.000000e+00 : f32
    %173 = vector.broadcast %cst_46 : f32 to vector<1x32xf32>
    %174 = arith.subf %172, %173 : vector<1x32xf32>
    %175 = vector.extract_strided_slice %167 {offsets = [0, 96], sizes = [1, 32], strides = [1, 1]} : vector<1x128xf32> to vector<1x32xf32>
    %176 = arith.mulf %169, %132 : vector<1x32xf32>
    %177 = arith.mulf %168, %174 : vector<1x32xf32>
    %178 = arith.addf %176, %177 : vector<1x32xf32>
    %179 = math.tanh %178 : vector<1x32xf32>
    %180 = arith.mulf %175, %179 : vector<1x32xf32>
    %181 = tpu.concatenate %180, %155 in 1 : vector<1x32xf32>, vector<1x32xf32> -> vector<1x64xf32>
    %cst_47 = arith.constant dense<0.000000e+00> : vector<1x128xf32>
    %182 = tpu.matmul %181, %15, %cst_47 {dimension_numbers = #tpu.dot_dimension_numbers<[1], [0], [0], [1], [0, 0, 1, 1], [], []>} : vector<1x64xf32>, vector<64x128xf32>, vector<1x128xf32> -> vector<1x128xf32>
    %183 = arith.addf %182, %16 : vector<1x128xf32>
    %184 = arith.negf %183 : vector<1x128xf32>
    %185 = math.exp %184 : vector<1x128xf32>
    %cst_48 = arith.constant 1.000000e+00 : f32
    %186 = vector.broadcast %cst_48 : f32 to vector<1x128xf32>
    %187 = arith.addf %186, %185 : vector<1x128xf32>
    %188 = arith.divf %186, %187 : vector<1x128xf32>
    %189 = vector.extract_strided_slice %188 {offsets = [0, 0], sizes = [1, 32], strides = [1, 1]} : vector<1x128xf32> to vector<1x32xf32>
    %190 = vector.extract_strided_slice %188 {offsets = [0, 32], sizes = [1, 32], strides = [1, 1]} : vector<1x128xf32> to vector<1x32xf32>
    %191 = vector.extract_strided_slice %188 {offsets = [0, 64], sizes = [1, 32], strides = [1, 1]} : vector<1x128xf32> to vector<1x32xf32>
    %cst_49 = arith.constant 2.000000e+00 : f32
    %192 = vector.broadcast %cst_49 : f32 to vector<1x32xf32>
    %193 = arith.mulf %192, %191 : vector<1x32xf32>
    %cst_50 = arith.constant 1.000000e+00 : f32
    %194 = vector.broadcast %cst_50 : f32 to vector<1x32xf32>
    %195 = arith.subf %193, %194 : vector<1x32xf32>
    %196 = vector.extract_strided_slice %188 {offsets = [0, 96], sizes = [1, 32], strides = [1, 1]} : vector<1x128xf32> to vector<1x32xf32>
    %197 = arith.mulf %190, %153 : vector<1x32xf32>
    %198 = arith.mulf %189, %195 : vector<1x32xf32>
    %199 = arith.addf %197, %198 : vector<1x32xf32>
    %200 = math.tanh %199 : vector<1x32xf32>
    %201 = arith.mulf %196, %200 : vector<1x32xf32>
    %c3_i32 = arith.constant 3 : i32
    %202 = vector.broadcast %c3_i32 : i32 to vector<8x32xi32>
    %203 = arith.cmpi eq, %21, %202 : vector<8x32xi32>
    %204 = vector.shape_cast %201 : vector<1x32xf32> to vector<1x32xf32>
    %205 = vector.broadcast %204 : vector<1x32xf32> to vector<8x32xf32>
    %206 = arith.select %203, %205, %160 : vector<8x32xi1>, vector<8x32xf32>
    %cst_51 = arith.constant dense<0.000000e+00> : vector<1x128xf32>
    %207 = tpu.matmul %180, %14, %cst_51 {dimension_numbers = #tpu.dot_dimension_numbers<[1], [0], [0], [1], [0, 0, 1, 1], [], []>} : vector<1x32xf32>, vector<32x128xf32>, vector<1x128xf32> -> vector<1x128xf32>
    %208 = arith.addf %10, %207 : vector<1x128xf32>
    %209 = arith.negf %208 : vector<1x128xf32>
    %210 = math.exp %209 : vector<1x128xf32>
    %cst_52 = arith.constant 1.000000e+00 : f32
    %211 = vector.broadcast %cst_52 : f32 to vector<1x128xf32>
    %212 = arith.addf %211, %210 : vector<1x128xf32>
    %213 = arith.divf %211, %212 : vector<1x128xf32>
    %214 = vector.extract_strided_slice %213 {offsets = [0, 0], sizes = [1, 32], strides = [1, 1]} : vector<1x128xf32> to vector<1x32xf32>
    %215 = vector.extract_strided_slice %213 {offsets = [0, 32], sizes = [1, 32], strides = [1, 1]} : vector<1x128xf32> to vector<1x32xf32>
    %216 = vector.extract_strided_slice %213 {offsets = [0, 64], sizes = [1, 32], strides = [1, 1]} : vector<1x128xf32> to vector<1x32xf32>
    %cst_53 = arith.constant 2.000000e+00 : f32
    %217 = vector.broadcast %cst_53 : f32 to vector<1x32xf32>
    %218 = arith.mulf %217, %216 : vector<1x32xf32>
    %cst_54 = arith.constant 1.000000e+00 : f32
    %219 = vector.broadcast %cst_54 : f32 to vector<1x32xf32>
    %220 = arith.subf %218, %219 : vector<1x32xf32>
    %221 = vector.extract_strided_slice %213 {offsets = [0, 96], sizes = [1, 32], strides = [1, 1]} : vector<1x128xf32> to vector<1x32xf32>
    %222 = arith.mulf %215, %178 : vector<1x32xf32>
    %223 = arith.mulf %214, %220 : vector<1x32xf32>
    %224 = arith.addf %222, %223 : vector<1x32xf32>
    %225 = math.tanh %224 : vector<1x32xf32>
    %226 = arith.mulf %221, %225 : vector<1x32xf32>
    %227 = tpu.concatenate %226, %201 in 1 : vector<1x32xf32>, vector<1x32xf32> -> vector<1x64xf32>
    %cst_55 = arith.constant dense<0.000000e+00> : vector<1x128xf32>
    %228 = tpu.matmul %227, %15, %cst_55 {dimension_numbers = #tpu.dot_dimension_numbers<[1], [0], [0], [1], [0, 0, 1, 1], [], []>} : vector<1x64xf32>, vector<64x128xf32>, vector<1x128xf32> -> vector<1x128xf32>
    %229 = arith.addf %228, %16 : vector<1x128xf32>
    %230 = arith.negf %229 : vector<1x128xf32>
    %231 = math.exp %230 : vector<1x128xf32>
    %cst_56 = arith.constant 1.000000e+00 : f32
    %232 = vector.broadcast %cst_56 : f32 to vector<1x128xf32>
    %233 = arith.addf %232, %231 : vector<1x128xf32>
    %234 = arith.divf %232, %233 : vector<1x128xf32>
    %235 = vector.extract_strided_slice %234 {offsets = [0, 0], sizes = [1, 32], strides = [1, 1]} : vector<1x128xf32> to vector<1x32xf32>
    %236 = vector.extract_strided_slice %234 {offsets = [0, 32], sizes = [1, 32], strides = [1, 1]} : vector<1x128xf32> to vector<1x32xf32>
    %237 = vector.extract_strided_slice %234 {offsets = [0, 64], sizes = [1, 32], strides = [1, 1]} : vector<1x128xf32> to vector<1x32xf32>
    %cst_57 = arith.constant 2.000000e+00 : f32
    %238 = vector.broadcast %cst_57 : f32 to vector<1x32xf32>
    %239 = arith.mulf %238, %237 : vector<1x32xf32>
    %cst_58 = arith.constant 1.000000e+00 : f32
    %240 = vector.broadcast %cst_58 : f32 to vector<1x32xf32>
    %241 = arith.subf %239, %240 : vector<1x32xf32>
    %242 = vector.extract_strided_slice %234 {offsets = [0, 96], sizes = [1, 32], strides = [1, 1]} : vector<1x128xf32> to vector<1x32xf32>
    %243 = arith.mulf %236, %199 : vector<1x32xf32>
    %244 = arith.mulf %235, %241 : vector<1x32xf32>
    %245 = arith.addf %243, %244 : vector<1x32xf32>
    %246 = math.tanh %245 : vector<1x32xf32>
    %247 = arith.mulf %242, %246 : vector<1x32xf32>
    %c4_i32 = arith.constant 4 : i32
    %248 = vector.broadcast %c4_i32 : i32 to vector<8x32xi32>
    %249 = arith.cmpi eq, %21, %248 : vector<8x32xi32>
    %250 = vector.shape_cast %247 : vector<1x32xf32> to vector<1x32xf32>
    %251 = vector.broadcast %250 : vector<1x32xf32> to vector<8x32xf32>
    %252 = arith.select %249, %251, %206 : vector<8x32xi1>, vector<8x32xf32>
    %cst_59 = arith.constant dense<0.000000e+00> : vector<1x128xf32>
    %253 = tpu.matmul %226, %14, %cst_59 {dimension_numbers = #tpu.dot_dimension_numbers<[1], [0], [0], [1], [0, 0, 1, 1], [], []>} : vector<1x32xf32>, vector<32x128xf32>, vector<1x128xf32> -> vector<1x128xf32>
    %254 = arith.addf %11, %253 : vector<1x128xf32>
    %255 = arith.negf %254 : vector<1x128xf32>
    %256 = math.exp %255 : vector<1x128xf32>
    %cst_60 = arith.constant 1.000000e+00 : f32
    %257 = vector.broadcast %cst_60 : f32 to vector<1x128xf32>
    %258 = arith.addf %257, %256 : vector<1x128xf32>
    %259 = arith.divf %257, %258 : vector<1x128xf32>
    %260 = vector.extract_strided_slice %259 {offsets = [0, 0], sizes = [1, 32], strides = [1, 1]} : vector<1x128xf32> to vector<1x32xf32>
    %261 = vector.extract_strided_slice %259 {offsets = [0, 32], sizes = [1, 32], strides = [1, 1]} : vector<1x128xf32> to vector<1x32xf32>
    %262 = vector.extract_strided_slice %259 {offsets = [0, 64], sizes = [1, 32], strides = [1, 1]} : vector<1x128xf32> to vector<1x32xf32>
    %cst_61 = arith.constant 2.000000e+00 : f32
    %263 = vector.broadcast %cst_61 : f32 to vector<1x32xf32>
    %264 = arith.mulf %263, %262 : vector<1x32xf32>
    %cst_62 = arith.constant 1.000000e+00 : f32
    %265 = vector.broadcast %cst_62 : f32 to vector<1x32xf32>
    %266 = arith.subf %264, %265 : vector<1x32xf32>
    %267 = vector.extract_strided_slice %259 {offsets = [0, 96], sizes = [1, 32], strides = [1, 1]} : vector<1x128xf32> to vector<1x32xf32>
    %268 = arith.mulf %261, %224 : vector<1x32xf32>
    %269 = arith.mulf %260, %266 : vector<1x32xf32>
    %270 = arith.addf %268, %269 : vector<1x32xf32>
    %271 = math.tanh %270 : vector<1x32xf32>
    %272 = arith.mulf %267, %271 : vector<1x32xf32>
    %273 = tpu.concatenate %272, %247 in 1 : vector<1x32xf32>, vector<1x32xf32> -> vector<1x64xf32>
    %cst_63 = arith.constant dense<0.000000e+00> : vector<1x128xf32>
    %274 = tpu.matmul %273, %15, %cst_63 {dimension_numbers = #tpu.dot_dimension_numbers<[1], [0], [0], [1], [0, 0, 1, 1], [], []>} : vector<1x64xf32>, vector<64x128xf32>, vector<1x128xf32> -> vector<1x128xf32>
    %275 = arith.addf %274, %16 : vector<1x128xf32>
    %276 = arith.negf %275 : vector<1x128xf32>
    %277 = math.exp %276 : vector<1x128xf32>
    %cst_64 = arith.constant 1.000000e+00 : f32
    %278 = vector.broadcast %cst_64 : f32 to vector<1x128xf32>
    %279 = arith.addf %278, %277 : vector<1x128xf32>
    %280 = arith.divf %278, %279 : vector<1x128xf32>
    %281 = vector.extract_strided_slice %280 {offsets = [0, 0], sizes = [1, 32], strides = [1, 1]} : vector<1x128xf32> to vector<1x32xf32>
    %282 = vector.extract_strided_slice %280 {offsets = [0, 32], sizes = [1, 32], strides = [1, 1]} : vector<1x128xf32> to vector<1x32xf32>
    %283 = vector.extract_strided_slice %280 {offsets = [0, 64], sizes = [1, 32], strides = [1, 1]} : vector<1x128xf32> to vector<1x32xf32>
    %cst_65 = arith.constant 2.000000e+00 : f32
    %284 = vector.broadcast %cst_65 : f32 to vector<1x32xf32>
    %285 = arith.mulf %284, %283 : vector<1x32xf32>
    %cst_66 = arith.constant 1.000000e+00 : f32
    %286 = vector.broadcast %cst_66 : f32 to vector<1x32xf32>
    %287 = arith.subf %285, %286 : vector<1x32xf32>
    %288 = vector.extract_strided_slice %280 {offsets = [0, 96], sizes = [1, 32], strides = [1, 1]} : vector<1x128xf32> to vector<1x32xf32>
    %289 = arith.mulf %282, %245 : vector<1x32xf32>
    %290 = arith.mulf %281, %287 : vector<1x32xf32>
    %291 = arith.addf %289, %290 : vector<1x32xf32>
    %292 = math.tanh %291 : vector<1x32xf32>
    %293 = arith.mulf %288, %292 : vector<1x32xf32>
    %c5_i32 = arith.constant 5 : i32
    %294 = vector.broadcast %c5_i32 : i32 to vector<8x32xi32>
    %295 = arith.cmpi eq, %21, %294 : vector<8x32xi32>
    %296 = vector.shape_cast %293 : vector<1x32xf32> to vector<1x32xf32>
    %297 = vector.broadcast %296 : vector<1x32xf32> to vector<8x32xf32>
    %298 = arith.select %295, %297, %252 : vector<8x32xi1>, vector<8x32xf32>
    %cst_67 = arith.constant dense<0.000000e+00> : vector<1x128xf32>
    %299 = tpu.matmul %272, %14, %cst_67 {dimension_numbers = #tpu.dot_dimension_numbers<[1], [0], [0], [1], [0, 0, 1, 1], [], []>} : vector<1x32xf32>, vector<32x128xf32>, vector<1x128xf32> -> vector<1x128xf32>
    %300 = arith.addf %12, %299 : vector<1x128xf32>
    %301 = arith.negf %300 : vector<1x128xf32>
    %302 = math.exp %301 : vector<1x128xf32>
    %cst_68 = arith.constant 1.000000e+00 : f32
    %303 = vector.broadcast %cst_68 : f32 to vector<1x128xf32>
    %304 = arith.addf %303, %302 : vector<1x128xf32>
    %305 = arith.divf %303, %304 : vector<1x128xf32>
    %306 = vector.extract_strided_slice %305 {offsets = [0, 0], sizes = [1, 32], strides = [1, 1]} : vector<1x128xf32> to vector<1x32xf32>
    %307 = vector.extract_strided_slice %305 {offsets = [0, 32], sizes = [1, 32], strides = [1, 1]} : vector<1x128xf32> to vector<1x32xf32>
    %308 = vector.extract_strided_slice %305 {offsets = [0, 64], sizes = [1, 32], strides = [1, 1]} : vector<1x128xf32> to vector<1x32xf32>
    %cst_69 = arith.constant 2.000000e+00 : f32
    %309 = vector.broadcast %cst_69 : f32 to vector<1x32xf32>
    %310 = arith.mulf %309, %308 : vector<1x32xf32>
    %cst_70 = arith.constant 1.000000e+00 : f32
    %311 = vector.broadcast %cst_70 : f32 to vector<1x32xf32>
    %312 = arith.subf %310, %311 : vector<1x32xf32>
    %313 = vector.extract_strided_slice %305 {offsets = [0, 96], sizes = [1, 32], strides = [1, 1]} : vector<1x128xf32> to vector<1x32xf32>
    %314 = arith.mulf %307, %270 : vector<1x32xf32>
    %315 = arith.mulf %306, %312 : vector<1x32xf32>
    %316 = arith.addf %314, %315 : vector<1x32xf32>
    %317 = math.tanh %316 : vector<1x32xf32>
    %318 = arith.mulf %313, %317 : vector<1x32xf32>
    %319 = tpu.concatenate %318, %293 in 1 : vector<1x32xf32>, vector<1x32xf32> -> vector<1x64xf32>
    %cst_71 = arith.constant dense<0.000000e+00> : vector<1x128xf32>
    %320 = tpu.matmul %319, %15, %cst_71 {dimension_numbers = #tpu.dot_dimension_numbers<[1], [0], [0], [1], [0, 0, 1, 1], [], []>} : vector<1x64xf32>, vector<64x128xf32>, vector<1x128xf32> -> vector<1x128xf32>
    %321 = arith.addf %320, %16 : vector<1x128xf32>
    %322 = arith.negf %321 : vector<1x128xf32>
    %323 = math.exp %322 : vector<1x128xf32>
    %cst_72 = arith.constant 1.000000e+00 : f32
    %324 = vector.broadcast %cst_72 : f32 to vector<1x128xf32>
    %325 = arith.addf %324, %323 : vector<1x128xf32>
    %326 = arith.divf %324, %325 : vector<1x128xf32>
    %327 = vector.extract_strided_slice %326 {offsets = [0, 0], sizes = [1, 32], strides = [1, 1]} : vector<1x128xf32> to vector<1x32xf32>
    %328 = vector.extract_strided_slice %326 {offsets = [0, 32], sizes = [1, 32], strides = [1, 1]} : vector<1x128xf32> to vector<1x32xf32>
    %329 = vector.extract_strided_slice %326 {offsets = [0, 64], sizes = [1, 32], strides = [1, 1]} : vector<1x128xf32> to vector<1x32xf32>
    %cst_73 = arith.constant 2.000000e+00 : f32
    %330 = vector.broadcast %cst_73 : f32 to vector<1x32xf32>
    %331 = arith.mulf %330, %329 : vector<1x32xf32>
    %cst_74 = arith.constant 1.000000e+00 : f32
    %332 = vector.broadcast %cst_74 : f32 to vector<1x32xf32>
    %333 = arith.subf %331, %332 : vector<1x32xf32>
    %334 = vector.extract_strided_slice %326 {offsets = [0, 96], sizes = [1, 32], strides = [1, 1]} : vector<1x128xf32> to vector<1x32xf32>
    %335 = arith.mulf %328, %291 : vector<1x32xf32>
    %336 = arith.mulf %327, %333 : vector<1x32xf32>
    %337 = arith.addf %335, %336 : vector<1x32xf32>
    %338 = math.tanh %337 : vector<1x32xf32>
    %339 = arith.mulf %334, %338 : vector<1x32xf32>
    %c6_i32 = arith.constant 6 : i32
    %340 = vector.broadcast %c6_i32 : i32 to vector<8x32xi32>
    %341 = arith.cmpi eq, %21, %340 : vector<8x32xi32>
    %342 = vector.shape_cast %339 : vector<1x32xf32> to vector<1x32xf32>
    %343 = vector.broadcast %342 : vector<1x32xf32> to vector<8x32xf32>
    %344 = arith.select %341, %343, %298 : vector<8x32xi1>, vector<8x32xf32>
    %cst_75 = arith.constant dense<0.000000e+00> : vector<1x128xf32>
    %345 = tpu.matmul %318, %14, %cst_75 {dimension_numbers = #tpu.dot_dimension_numbers<[1], [0], [0], [1], [0, 0, 1, 1], [], []>} : vector<1x32xf32>, vector<32x128xf32>, vector<1x128xf32> -> vector<1x128xf32>
    %346 = arith.addf %13, %345 : vector<1x128xf32>
    %347 = arith.negf %346 : vector<1x128xf32>
    %348 = math.exp %347 : vector<1x128xf32>
    %cst_76 = arith.constant 1.000000e+00 : f32
    %349 = vector.broadcast %cst_76 : f32 to vector<1x128xf32>
    %350 = arith.addf %349, %348 : vector<1x128xf32>
    %351 = arith.divf %349, %350 : vector<1x128xf32>
    %352 = vector.extract_strided_slice %351 {offsets = [0, 0], sizes = [1, 32], strides = [1, 1]} : vector<1x128xf32> to vector<1x32xf32>
    %353 = vector.extract_strided_slice %351 {offsets = [0, 32], sizes = [1, 32], strides = [1, 1]} : vector<1x128xf32> to vector<1x32xf32>
    %354 = vector.extract_strided_slice %351 {offsets = [0, 64], sizes = [1, 32], strides = [1, 1]} : vector<1x128xf32> to vector<1x32xf32>
    %cst_77 = arith.constant 2.000000e+00 : f32
    %355 = vector.broadcast %cst_77 : f32 to vector<1x32xf32>
    %356 = arith.mulf %355, %354 : vector<1x32xf32>
    %cst_78 = arith.constant 1.000000e+00 : f32
    %357 = vector.broadcast %cst_78 : f32 to vector<1x32xf32>
    %358 = arith.subf %356, %357 : vector<1x32xf32>
    %359 = vector.extract_strided_slice %351 {offsets = [0, 96], sizes = [1, 32], strides = [1, 1]} : vector<1x128xf32> to vector<1x32xf32>
    %360 = arith.mulf %353, %316 : vector<1x32xf32>
    %361 = arith.mulf %352, %358 : vector<1x32xf32>
    %362 = arith.addf %360, %361 : vector<1x32xf32>
    %363 = math.tanh %362 : vector<1x32xf32>
    %364 = arith.mulf %359, %363 : vector<1x32xf32>
    %365 = tpu.concatenate %364, %339 in 1 : vector<1x32xf32>, vector<1x32xf32> -> vector<1x64xf32>
    %cst_79 = arith.constant dense<0.000000e+00> : vector<1x128xf32>
    %366 = tpu.matmul %365, %15, %cst_79 {dimension_numbers = #tpu.dot_dimension_numbers<[1], [0], [0], [1], [0, 0, 1, 1], [], []>} : vector<1x64xf32>, vector<64x128xf32>, vector<1x128xf32> -> vector<1x128xf32>
    %367 = arith.addf %366, %16 : vector<1x128xf32>
    %368 = arith.negf %367 : vector<1x128xf32>
    %369 = math.exp %368 : vector<1x128xf32>
    %cst_80 = arith.constant 1.000000e+00 : f32
    %370 = vector.broadcast %cst_80 : f32 to vector<1x128xf32>
    %371 = arith.addf %370, %369 : vector<1x128xf32>
    %372 = arith.divf %370, %371 : vector<1x128xf32>
    %373 = vector.extract_strided_slice %372 {offsets = [0, 0], sizes = [1, 32], strides = [1, 1]} : vector<1x128xf32> to vector<1x32xf32>
    %374 = vector.extract_strided_slice %372 {offsets = [0, 32], sizes = [1, 32], strides = [1, 1]} : vector<1x128xf32> to vector<1x32xf32>
    %375 = vector.extract_strided_slice %372 {offsets = [0, 64], sizes = [1, 32], strides = [1, 1]} : vector<1x128xf32> to vector<1x32xf32>
    %cst_81 = arith.constant 2.000000e+00 : f32
    %376 = vector.broadcast %cst_81 : f32 to vector<1x32xf32>
    %377 = arith.mulf %376, %375 : vector<1x32xf32>
    %cst_82 = arith.constant 1.000000e+00 : f32
    %378 = vector.broadcast %cst_82 : f32 to vector<1x32xf32>
    %379 = arith.subf %377, %378 : vector<1x32xf32>
    %380 = vector.extract_strided_slice %372 {offsets = [0, 96], sizes = [1, 32], strides = [1, 1]} : vector<1x128xf32> to vector<1x32xf32>
    %381 = arith.mulf %374, %337 : vector<1x32xf32>
    %382 = arith.mulf %373, %379 : vector<1x32xf32>
    %383 = arith.addf %381, %382 : vector<1x32xf32>
    %384 = math.tanh %383 : vector<1x32xf32>
    %385 = arith.mulf %380, %384 : vector<1x32xf32>
    %c7_i32 = arith.constant 7 : i32
    %386 = vector.broadcast %c7_i32 : i32 to vector<8x32xi32>
    %387 = arith.cmpi eq, %21, %386 : vector<8x32xi32>
    %388 = vector.shape_cast %385 : vector<1x32xf32> to vector<1x32xf32>
    %389 = vector.broadcast %388 : vector<1x32xf32> to vector<8x32xf32>
    %390 = arith.select %387, %389, %344 : vector<8x32xi1>, vector<8x32xf32>
    %391 = tpu.iota {dimensions = array<i32: 0>} : vector<2x32xi32>
    %c0_i32_83 = arith.constant 0 : i32
    %392 = vector.broadcast %c0_i32_83 : i32 to vector<2x32xi32>
    %393 = arith.cmpi eq, %391, %392 : vector<2x32xi32>
    %394 = vector.shape_cast %364 : vector<1x32xf32> to vector<1x32xf32>
    %395 = vector.broadcast %394 : vector<1x32xf32> to vector<2x32xf32>
    %396 = vector.shape_cast %385 : vector<1x32xf32> to vector<1x32xf32>
    %397 = vector.broadcast %396 : vector<1x32xf32> to vector<2x32xf32>
    %398 = arith.select %393, %395, %397 : vector<2x32xi1>, vector<2x32xf32>
    %c0_84 = arith.constant 0 : index
    %c0_85 = arith.constant 0 : index
    %399 = vector.load %arg11[%c0_84, %c0_85] : memref<2x32xf32, #tpu.memory_space<vmem>>, vector<2x32xf32>
    tpu.vector_store %arg11[%c0_84, %c0_85], %398 {strides = array<i32>} : memref<2x32xf32, #tpu.memory_space<vmem>>, vector<2x32xf32>,
    %c0_i32_86 = arith.constant 0 : i32
    %400 = vector.broadcast %c0_i32_86 : i32 to vector<2x32xi32>
    %401 = arith.cmpi eq, %391, %400 : vector<2x32xi32>
    %402 = vector.shape_cast %362 : vector<1x32xf32> to vector<1x32xf32>
    %403 = vector.broadcast %402 : vector<1x32xf32> to vector<2x32xf32>
    %404 = vector.shape_cast %383 : vector<1x32xf32> to vector<1x32xf32>
    %405 = vector.broadcast %404 : vector<1x32xf32> to vector<2x32xf32>
    %406 = arith.select %401, %403, %405 : vector<2x32xi1>, vector<2x32xf32>
    %c0_87 = arith.constant 0 : index
    %c0_88 = arith.constant 0 : index
    %407 = vector.load %arg12[%c0_87, %c0_88] : memref<2x32xf32, #tpu.memory_space<vmem>>, vector<2x32xf32>
    tpu.vector_store %arg12[%c0_87, %c0_88], %406 {strides = array<i32>} : memref<2x32xf32, #tpu.memory_space<vmem>>, vector<2x32xf32>,
    %c0_89 = arith.constant 0 : index
    %c0_90 = arith.constant 0 : index
    %408 = vector.load %arg8[%c0_89, %c0_90] : memref<32x128xf32, #tpu.memory_space<vmem>>, vector<32x128xf32>
    %cst_91 = arith.constant dense<0.000000e+00> : vector<8x128xf32>
    %409 = tpu.matmul %390, %408, %cst_91 {dimension_numbers = #tpu.dot_dimension_numbers<[1], [0], [0], [1], [0, 0, 1, 1], [], []>} : vector<8x32xf32>, vector<32x128xf32>, vector<8x128xf32> -> vector<8x128xf32>
    %c0_92 = arith.constant 0 : index
    %c0_93 = arith.constant 0 : index
    %410 = vector.load %arg9[%c0_92, %c0_93] : memref<1x128xf32, #tpu.memory_space<vmem>>, vector<1x128xf32>
    %411 = vector.broadcast %410 : vector<1x128xf32> to vector<8x128xf32>
    %412 = arith.addf %409, %411 : vector<8x128xf32>
    %413 = arith.negf %412 : vector<8x128xf32>
    %414 = math.exp %413 : vector<8x128xf32>
    %cst_94 = arith.constant 1.000000e+00 : f32
    %415 = vector.broadcast %cst_94 : f32 to vector<8x128xf32>
    %416 = arith.addf %415, %414 : vector<8x128xf32>
    %417 = arith.divf %415, %416 : vector<8x128xf32>
    %c0_95 = arith.constant 0 : index
    %c0_96 = arith.constant 0 : index
    %418 = vector.load %arg10[%c0_95, %c0_96] : memref<8x128xf32, #tpu.memory_space<vmem>>, vector<8x128xf32>
    tpu.vector_store %arg10[%c0_95, %c0_96], %417 {strides = array<i32>} : memref<8x128xf32, #tpu.memory_space<vmem>>, vector<8x128xf32>,
    return
  }
}

</mosaic_0001>

<llo_original>
// kernel: single_lstm_forward.1
$region0: #{single_lstm_forward.1}
  #allocation0 [shape = 'u32[]', space=smem, size = 0x4, offset = 0x4, fixed_abs, tag = 'smem constant byte address 0x4 - core index']
  #allocation1 [shape = 'u32[144,128]{1,0:T(1,128)}', space=vmem, size = 0x12000, scoped, tag = 'internal scratch']
  %s0 = inlined_call_operand.vmem [shape: f32[8,8], index: 0, kind: input, shape index: {}]
  %s1 = inlined_call_operand.hbm [shape: f32[8,128], index: 1, kind: input, shape index: {}]
  %s2 = inlined_call_operand.hbm [shape: f32[32,128], index: 2, kind: input, shape index: {}]
  %s3 = inlined_call_operand.hbm [shape: f32[1,128], index: 3, kind: input, shape index: {}]
  %s4 = inlined_call_operand.hbm [shape: f32[64,128], index: 4, kind: input, shape index: {}]
  %s5 = inlined_call_operand.hbm [shape: f32[1,128], index: 5, kind: input, shape index: {}]
  %s6 = inlined_call_operand.vmem [shape: f32[2,32], index: 6, kind: input, shape index: {}]
  %s7 = inlined_call_operand.vmem [shape: f32[2,32], index: 7, kind: input, shape index: {}]
  %s8 = inlined_call_operand.vmem [shape: f32[32,128], index: 8, kind: input, shape index: {}]
  %s9 = inlined_call_operand.vmem [shape: f32[1,128], index: 9, kind: input, shape index: {}]
  %s10 = inlined_call_operand.vmem [shape: f32[8,128], index: 10, kind: output, shape index: {0}]
  %s11 = inlined_call_operand.hbm [shape: f32[2,32], index: 11, kind: output, shape index: {1}]
  %s12 = inlined_call_operand.hbm [shape: f32[2,32], index: 12, kind: output, shape index: {2}]
  %13 = xla_tuple %s10, %s11, %s12
  %s14 = sld [smem:[#allocation0]]
  $region86: #{single_lstm_forward.1} parent=0
    _
  %s16 = ssub.s32 1, %s14
  %s17 = scalar_select 0, %s16, %s14
  $region1: #{single_lstm_forward.1} parent=0
    #allocation2 [shape = 'u8[4096]{0}', space=vmem, size = 0x1000, scoped, tag = 'input window, operand 1, single buffered']
    #allocation3 [shape = 's32[1]{0}', space=sflag, size = 0x4, scoped, tag = 'scoped memory for single_lstm_forward.1']
    #allocation4 [shape = 's32[1]{0}', space=sflag, size = 0x4, scoped, tag = 'scoped memory for single_lstm_forward.1']
    #allocation5 [shape = 'u8[16384]{0}', space=vmem, size = 0x4000, scoped, tag = 'input window, operand 2, single buffered']
    #allocation6 [shape = 's32[1]{0}', space=sflag, size = 0x4, scoped, tag = 'scoped memory for single_lstm_forward.1']
    #allocation7 [shape = 'u8[512]{0}', space=vmem, size = 0x400, scoped, tag = 'input window, operand 3, single buffered']
    #allocation8 [shape = 'u8[32768]{0}', space=vmem, size = 0x8000, scoped, tag = 'input window, operand 4, single buffered']
    #allocation9 [shape = 's32[1]{0}', space=sflag, size = 0x4, scoped, tag = 'scoped memory for single_lstm_forward.1']
    #allocation10 [shape = 'u8[512]{0}', space=vmem, size = 0x400, scoped, tag = 'input window, operand 5, single buffered']
    #allocation11 [shape = 'u8[1024]{0}', space=vmem, size = 0x400, scoped, tag = 'output window, operand 1, single buffered']
    #allocation12 [shape = 'u8[1024]{0}', space=vmem, size = 0x400, scoped, tag = 'output window, operand 2, single buffered']
    #allocation13 [shape = 's32[1]{0}', space=sflag, size = 0x4, scoped, tag = 'scoped memory for single_lstm_forward.1']
    %18 = vsyncpa [#allocation3], 0
    %19 = vsyncpa [#allocation6], 0
    %20 = vsyncpa [#allocation9], 0
    %21 = vsyncpa [#allocation4], 0
    %22 = vsyncpa [#allocation13], 0
    // Predicated region
    $region2: #{single_lstm_forward.1} parent=1 // pred_check
      _
    $region3: #{single_lstm_forward.1} parent=1 // pred_check_branch
      %24 = sbr.rel (0) target = $region5
    $region4: #{single_lstm_forward.1} parent=1 // pred_region
      _
    $region5: #{single_lstm_forward.1} parent=1 // pred_fallthru
      _
    // Predicated region
    $region6: #{single_lstm_forward.1} parent=1 // pred_check
      _
    $region7: #{single_lstm_forward.1} parent=1 // pred_check_branch
      %26 = sbr.rel (0) target = $region9
    $region8: #{single_lstm_forward.1} parent=1 // pred_region
      %s28 = ssub.s32 128, 128
      %29 = vsyncadd [#allocation3], %s28
      %s31 = sshll.u32 [#allocation2], 4
      %s32 = int_to_ptr.vmem [resolvable:$true] %s31
      %34 = dma.hbm_to_vmem [thread:$0]  %s1, 128, %s32, [#allocation3]
    $region9: #{single_lstm_forward.1} parent=1 // pred_fallthru
      _
    // Predicated region
    $region10: #{single_lstm_forward.1} parent=1 // pred_check
      _
    $region11: #{single_lstm_forward.1} parent=1 // pred_check_branch
      %36 = sbr.rel (0) target = $region13
    $region12: #{single_lstm_forward.1} parent=1 // pred_region
      %s38 = ssub.s32 512, 512
      %39 = vsyncadd [#allocation6], %s38
      %s40 = sshll.u32 [#allocation5], 4
      %s41 = int_to_ptr.vmem [resolvable:$true] %s40
      %46 = dma.hbm_to_vmem [thread:$0]  %s2, 512, %s41, [#allocation6], 128, 128, 8
    $region13: #{single_lstm_forward.1} parent=1 // pred_fallthru
      _
    // Predicated region
    $region14: #{single_lstm_forward.1} parent=1 // pred_check
      _
    $region15: #{single_lstm_forward.1} parent=1 // pred_check_branch
      %48 = sbr.rel (0) target = $region17
    $region16: #{single_lstm_forward.1} parent=1 // pred_region
      %s50 = ssub.s32 16, 16
      %51 = vsyncadd [#allocation6], %s50
      %s53 = sshll.u32 [#allocation7], 4
      %s54 = int_to_ptr.vmem [resolvable:$true] %s53
      %56 = dma.hbm_to_vmem [thread:$0]  %s3, 16, %s54, [#allocation6]
    $region17: #{single_lstm_forward.1} parent=1 // pred_fallthru
      _
    // Predicated region
    $region18: #{single_lstm_forward.1} parent=1 // pred_check
      _
    $region19: #{single_lstm_forward.1} parent=1 // pred_check_branch
      %58 = sbr.rel (0) target = $region21
    $region20: #{single_lstm_forward.1} parent=1 // pred_region
      %s60 = ssub.s32 1024, 1024
      %61 = vsyncadd [#allocation9], %s60
      %s62 = sshll.u32 [#allocation8], 4
      %s63 = int_to_ptr.vmem [resolvable:$true] %s62
      %68 = dma.hbm_to_vmem [thread:$0]  %s4, 1024, %s63, [#allocation9], 128, 128, 8
    $region21: #{single_lstm_forward.1} parent=1 // pred_fallthru
      _
    // Predicated region
    $region22: #{single_lstm_forward.1} parent=1 // pred_check
      _
    $region23: #{single_lstm_forward.1} parent=1 // pred_check_branch
      %70 = sbr.rel (0) target = $region25
    $region24: #{single_lstm_forward.1} parent=1 // pred_region
      %s72 = ssub.s32 16, 16
      %73 = vsyncadd [#allocation9], %s72
      %s75 = sshll.u32 [#allocation10], 4
      %s76 = int_to_ptr.vmem [resolvable:$true] %s75
      %78 = dma.hbm_to_vmem [thread:$0]  %s5, 16, %s76, [#allocation9]
    $region25: #{single_lstm_forward.1} parent=1 // pred_fallthru
      _
    // Predicated region
    $region26: #{single_lstm_forward.1} parent=1 // pred_check
      _
    $region27: #{single_lstm_forward.1} parent=1 // pred_check_branch
      %80 = sbr.rel (0) target = $region29
    $region28: #{single_lstm_forward.1} parent=1 // pred_region
      _
    $region29: #{single_lstm_forward.1} parent=1 // pred_fallthru
      _
    // Predicated region
    $region30: #{single_lstm_forward.1} parent=1 // pred_check
      _
    $region31: #{single_lstm_forward.1} parent=1 // pred_check_branch
      %82 = sbr.rel (0) target = $region33
    $region32: #{single_lstm_forward.1} parent=1 // pred_region
      _
    $region33: #{single_lstm_forward.1} parent=1 // pred_fallthru
      _
    // Predicated region
    $region34: #{single_lstm_forward.1} parent=1 // pred_check
      _
    $region35: #{single_lstm_forward.1} parent=1 // pred_check_branch
      %84 = sbr.rel (0) target = $region37
    $region36: #{single_lstm_forward.1} parent=1 // pred_region
      _
    $region37: #{single_lstm_forward.1} parent=1 // pred_fallthru
      _
    // Predicated region
    $region38: #{single_lstm_forward.1} parent=1 // pred_check
      _
    $region39: #{single_lstm_forward.1} parent=1 // pred_check_branch
      %86 = sbr.rel (0) target = $region41
    $region40: #{single_lstm_forward.1} parent=1 // pred_region
      _
    $region41: #{single_lstm_forward.1} parent=1 // pred_fallthru
      _
    // Predicated region
    $region42: #{single_lstm_forward.1} parent=1 // pred_check
      _
    $region43: #{single_lstm_forward.1} parent=1 // pred_check_branch
      %88 = sbr.rel (0) target = $region45
    $region44: #{single_lstm_forward.1} parent=1 // pred_region
      %89 = dma.done [#allocation3], 128
    $region45: #{single_lstm_forward.1} parent=1 // pred_fallthru
      _
    // Predicated region
    $region46: #{single_lstm_forward.1} parent=1 // pred_check
      _
    $region47: #{single_lstm_forward.1} parent=1 // pred_check_branch
      %91 = sbr.rel (0) target = $region49
    $region48: #{single_lstm_forward.1} parent=1 // pred_region
      %92 = dma.done [#allocation6], 512
    $region49: #{single_lstm_forward.1} parent=1 // pred_fallthru
      _
    // Predicated region
    $region50: #{single_lstm_forward.1} parent=1 // pred_check
      _
    $region51: #{single_lstm_forward.1} parent=1 // pred_check_branch
      %94 = sbr.rel (0) target = $region53
    $region52: #{single_lstm_forward.1} parent=1 // pred_region
      %95 = dma.done [#allocation6], 16
    $region53: #{single_lstm_forward.1} parent=1 // pred_fallthru
      _
    // Predicated region
    $region54: #{single_lstm_forward.1} parent=1 // pred_check
      _
    $region55: #{single_lstm_forward.1} parent=1 // pred_check_branch
      %97 = sbr.rel (0) target = $region57
    $region56: #{single_lstm_forward.1} parent=1 // pred_region
      %98 = dma.done [#allocation9], 1024
    $region57: #{single_lstm_forward.1} parent=1 // pred_fallthru
      _
    // Predicated region
    $region58: #{single_lstm_forward.1} parent=1 // pred_check
      _
    $region59: #{single_lstm_forward.1} parent=1 // pred_check_branch
      %100 = sbr.rel (0) target = $region61
    $region60: #{single_lstm_forward.1} parent=1 // pred_region
      %101 = dma.done [#allocation9], 16
    $region61: #{single_lstm_forward.1} parent=1 // pred_fallthru
      _
    %v102 = vld [vmem:[%s0] sm:$0xff]
    %v103 = vld [vmem:[#allocation2] sm:$0xff]
    %v104 = vld [vmem:[#allocation7] sm:$0x1]
    %v106 = vlaneseq
    %v107 = vshrl.u32 %v106, 7
    %v108 = vsub.s32 0, %v107
    %v109 = vrot.slane %v104, %v108
    %vm111 = vcmask 64512
    %v113 = vsel %vm111, %v102, 0
    %115 = vmatprep.subr.mxu0 0.0
    %116 = vmatpush1.msra.mxu0 %v103
    %117 = vmatprep.subr.mxu0 0.0
    %118 = vmatpush1.msra.mxu0 0.0
    %119 = vmatprep.subr.mxu0 0.0
    %120 = vmatpush1.msra.mxu0 0.0
    %121 = vmatprep.subr.mxu0 0.0
    %122 = vmatpush1.msra.mxu0 0.0
    %123 = vmatprep.subr.mxu0 0.0
    %124 = vmatpush1.msra.mxu0 0.0
    %125 = vmatprep.subr.mxu0 0.0
    %126 = vmatpush1.msra.mxu0 0.0
    %127 = vmatprep.subr.mxu0 0.0
    %128 = vmatpush1.msra.mxu0 0.0
    %129 = vmatprep.subr.mxu0 0.0
    %130 = vmatpush1.msra.mxu0 0.0
    %131 = vmatprep.subr.mxu0 0.0
    %132 = vmatpush1.msra.mxu0 0.0
    %133 = vmatprep.subr.mxu0 0.0
    %134 = vmatpush1.msra.mxu0 0.0
    %135 = vmatprep.subr.mxu0 0.0
    %136 = vmatpush1.msra.mxu0 0.0
    %137 = vmatprep.subr.mxu0 0.0
    %138 = vmatpush1.msra.mxu0 0.0
    %139 = vmatprep.subr.mxu0 0.0
    %140 = vmatpush1.msra.mxu0 0.0
    %141 = vmatprep.subr.mxu0 0.0
    %142 = vmatpush1.msra.mxu0 0.0
    %143 = vmatprep.subr.mxu0 0.0
    %144 = vmatpush1.msra.mxu0 0.0
    %145 = vmatprep.subr.mxu0 0.0
    %146 = vmatpush1.msra.mxu0 0.0
    %147 = vmatprep.subr.mxu0 0.0
    %148 = vmatpush1.msra.mxu0 0.0
    %149 = vmatprep.subr.mxu0 0.0
    %150 = vmatpush1.msra.mxu0 0.0
    %151 = vmatprep.subr.mxu0 0.0
    %152 = vmatpush1.msra.mxu0 0.0
    %153 = vmatprep.subr.mxu0 0.0
    %154 = vmatpush1.msra.mxu0 0.0
    %155 = vmatprep.subr.mxu0 0.0
    %156 = vmatpush1.msra.mxu0 0.0
    %157 = vmatprep.subr.mxu0 0.0
    %158 = vmatpush1.msra.mxu0 0.0
    %159 = vmatprep.subr.mxu0 0.0
    %160 = vmatpush1.msra.mxu0 0.0
    %161 = vmatprep.subr.mxu0 0.0
    %162 = vmatpush1.msra.mxu0 0.0
    %163 = vmatprep.subr.mxu0 0.0
    %164 = vmatpush1.msra.mxu0 0.0
    %165 = vmatprep.subr.mxu0 0.0
    %166 = vmatpush1.msra.mxu0 0.0
    %167 = vmatprep.subr.mxu0 0.0
    %168 = vmatpush1.msra.mxu0 0.0
    %169 = vmatprep.subr.mxu0 0.0
    %170 = vmatpush1.msra.mxu0 0.0
    %171 = vmatprep.subr.mxu0 0.0
    %172 = vmatpush1.msra.mxu0 0.0
    %173 = vmatprep.subr.mxu0 0.0
    %174 = vmatpush1.msra.mxu0 0.0
    %175 = vmatprep.subr.mxu0 0.0
    %176 = vmatpush1.msra.mxu0 0.0
    %177 = vmatprep.subr.mxu0 0.0
    %178 = vmatpush1.msra.mxu0 0.0
    %179 = vmatprep.mubr.f32.mxu0 0.0
    %180 = vmatmul.mubr.f32.gmra.mrb[0].mxu0 %v113
    %v181 = vpop.f32.mrb[0].mxu0
    %v182 = vadd.f32 %v109, %v181
    %v183 = vpop.f32.mrb[0].mxu0
    %184 = vdwg.mxu0
    %v185 = vld [vmem:[#allocation5] sm:$0xff]
    %v186 = vld [vmem:[#allocation5 + $0x8] sm:$0xff]
    %v187 = vld [vmem:[#allocation5 + $0x10] sm:$0xff]
    %v188 = vld [vmem:[#allocation5 + $0x18] sm:$0xff]
    %v189 = vld [vmem:[#allocation8] sm:$0xff]
    %v190 = vld [vmem:[#allocation8 + $0x8] sm:$0xff]
    %v191 = vld [vmem:[#allocation8 + $0x10] sm:$0xff]
    %v192 = vld [vmem:[#allocation8 + $0x18] sm:$0xff]
    %v193 = vld [vmem:[#allocation8 + $0x20] sm:$0xff]
    %v194 = vld [vmem:[#allocation8 + $0x28] sm:$0xff]
    %v195 = vld [vmem:[#allocation8 + $0x30] sm:$0xff]
    %v196 = vld [vmem:[#allocation8 + $0x38] sm:$0xff]
    %v197 = vld [vmem:[#allocation10] sm:$0x1]
    %v198 = vld [vmem:[%s6] sm:$0x1]
    %v199 = vld [vmem:[%s7] sm:$0x1]
    %v200 = vld [vmem:[%s6 + $0x1] sm:$0x1]
    %v201 = vld [vmem:[%s7 + $0x1] sm:$0x1]
    %v202 = vlaneseq
    %v203 = vshrl.u32 %v202, 7
    %vm204 = vcmask 261120
    %v206 = vsel %vm204, %v198, 0
    %208 = vmatprep.subr.mxu0 0.0
    %209 = vmatpush1.msra.mxu0 %v185
    %210 = vmatprep.subr.mxu0 0.0
    %211 = vmatpush1.msra.mxu0 %v186
    %212 = vmatprep.subr.mxu0 0.0
    %213 = vmatpush1.msra.mxu0 %v187
    %214 = vmatprep.subr.mxu0 0.0
    %215 = vmatpush1.msra.mxu0 %v188
    %216 = vmatprep.subr.mxu0 0.0
    %217 = vmatpush1.msra.mxu0 0.0
    %218 = vmatprep.subr.mxu0 0.0
    %219 = vmatpush1.msra.mxu0 0.0
    %220 = vmatprep.subr.mxu0 0.0
    %221 = vmatpush1.msra.mxu0 0.0
    %222 = vmatprep.subr.mxu0 0.0
    %223 = vmatpush1.msra.mxu0 0.0
    %224 = vmatprep.subr.mxu0 0.0
    %225 = vmatpush1.msra.mxu0 0.0
    %226 = vmatprep.subr.mxu0 0.0
    %227 = vmatpush1.msra.mxu0 0.0
    %228 = vmatprep.subr.mxu0 0.0
    %229 = vmatpush1.msra.mxu0 0.0
    %230 = vmatprep.subr.mxu0 0.0
    %231 = vmatpush1.msra.mxu0 0.0
    %232 = vmatprep.subr.mxu0 0.0
    %233 = vmatpush1.msra.mxu0 0.0
    %234 = vmatprep.subr.mxu0 0.0
    %235 = vmatpush1.msra.mxu0 0.0
    %236 = vmatprep.subr.mxu0 0.0
    %237 = vmatpush1.msra.mxu0 0.0
    %238 = vmatprep.subr.mxu0 0.0
    %239 = vmatpush1.msra.mxu0 0.0
    %240 = vmatprep.subr.mxu0 0.0
    %241 = vmatpush1.msra.mxu0 0.0
    %242 = vmatprep.subr.mxu0 0.0
    %243 = vmatpush1.msra.mxu0 0.0
    %244 = vmatprep.subr.mxu0 0.0
    %245 = vmatpush1.msra.mxu0 0.0
    %246 = vmatprep.subr.mxu0 0.0
    %247 = vmatpush1.msra.mxu0 0.0
    %248 = vmatprep.subr.mxu0 0.0
    %249 = vmatpush1.msra.mxu0 0.0
    %250 = vmatprep.subr.mxu0 0.0
    %251 = vmatpush1.msra.mxu0 0.0
    %252 = vmatprep.subr.mxu0 0.0
    %253 = vmatpush1.msra.mxu0 0.0
    %254 = vmatprep.subr.mxu0 0.0
    %255 = vmatpush1.msra.mxu0 0.0
    %256 = vmatprep.subr.mxu0 0.0
    %257 = vmatpush1.msra.mxu0 0.0
    %258 = vmatprep.subr.mxu0 0.0
    %259 = vmatpush1.msra.mxu0 0.0
    %260 = vmatprep.subr.mxu0 0.0
    %261 = vmatpush1.msra.mxu0 0.0
    %262 = vmatprep.subr.mxu0 0.0
    %263 = vmatpush1.msra.mxu0 0.0
    %264 = vmatprep.subr.mxu0 0.0
    %265 = vmatpush1.msra.mxu0 0.0
    %266 = vmatprep.subr.mxu0 0.0
    %267 = vmatpush1.msra.mxu0 0.0
    %268 = vmatprep.subr.mxu0 0.0
    %269 = vmatpush1.msra.mxu0 0.0
    %270 = vmatprep.subr.mxu0 0.0
    %271 = vmatpush1.msra.mxu0 0.0
    %272 = vmatprep.mubr.f32.mxu0 0.0
    %273 = vmatmul.mubr.f32.gmra.mrb[0].mxu0 %v206
    %v274 = vpop.f32.mrb[0].mxu0
    %v275 = vadd.f32 0.0, %v274
    %v276 = vpop.f32.mrb[0].mxu0
    %277 = vdwg.mxu0
    %v278 = vadd.f32 %v182, %v275
    %v279 = vxor.u32 %v278, 2147483648
    %v280 = vmul.f32 %v279, 1.442695
    %v281 = vpow.pop %v280
    %v282 = vadd.f32 %v281, 1.0
    %v283 = vrcp.pop %v282
    %v284 = vmul.f32 1.0, %v283
    %v285 = vmul.f32 %v284, 2.0
    %v286 = vsub.f32 %v285, 1.0
    %288 = vrot.lane.b32.xlu0 %v199, 32
    %v289 = vpop.permute.xlu0 %288
    %v291 = vmul.f32 %v284, %v289
    %293 = vrot.lane.b32.xlu0 %v286, 64
    %v294 = vpop.permute.xlu0 %293
    %v296 = vmul.f32 %v284, %v294
    %298 = vrot.lane.b32.xlu0 %v296, 32
    %v299 = vpop.permute.xlu0 %298
    %v301 = vadd.f32 %v291, %v299
    %v302 = vtanh.pop %v301
    %304 = vrot.lane.b32.xlu0 %v302, 64
    %v305 = vpop.permute.xlu0 %304
    %v307 = vmul.f32 %v284, %v305
    %309 = vrot.lane.b32.xlu0 %v307, 32
    %v310 = vpop.permute.xlu0 %309
    %313 = vrot.lane.b32.xlu0 %v200, 32
    %v314 = vpop.permute.xlu0 %313
    %v316 = vsel %vm204, %v310, %v314
    %vm317 = vcmask 523264
    %v319 = vsel %vm317, %v316, 0
    %321 = vmatprep.subr.mxu0 0.0
    %322 = vmatpush1.msra.mxu0 %v189
    %323 = vmatprep.subr.mxu0 0.0
    %324 = vmatpush1.msra.mxu0 %v190
    %325 = vmatprep.subr.mxu0 0.0
    %326 = vmatpush1.msra.mxu0 %v191
    %327 = vmatprep.subr.mxu0 0.0
    %328 = vmatpush1.msra.mxu0 %v192
    %329 = vmatprep.subr.mxu0 0.0
    %330 = vmatpush1.msra.mxu0 %v193
    %331 = vmatprep.subr.mxu0 0.0
    %332 = vmatpush1.msra.mxu0 %v194
    %333 = vmatprep.subr.mxu0 0.0
    %334 = vmatpush1.msra.mxu0 %v195
    %335 = vmatprep.subr.mxu0 0.0
    %336 = vmatpush1.msra.mxu0 %v196
    %337 = vmatprep.subr.mxu0 0.0
    %338 = vmatpush1.msra.mxu0 0.0
    %339 = vmatprep.subr.mxu0 0.0
    %340 = vmatpush1.msra.mxu0 0.0
    %341 = vmatprep.subr.mxu0 0.0
    %342 = vmatpush1.msra.mxu0 0.0
    %343 = vmatprep.subr.mxu0 0.0
    %344 = vmatpush1.msra.mxu0 0.0
    %345 = vmatprep.subr.mxu0 0.0
    %346 = vmatpush1.msra.mxu0 0.0
    %347 = vmatprep.subr.mxu0 0.0
    %348 = vmatpush1.msra.mxu0 0.0
    %349 = vmatprep.subr.mxu0 0.0
    %350 = vmatpush1.msra.mxu0 0.0
    %351 = vmatprep.subr.mxu0 0.0
    %352 = vmatpush1.msra.mxu0 0.0
    %353 = vmatprep.subr.mxu0 0.0
    %354 = vmatpush1.msra.mxu0 0.0
    %355 = vmatprep.subr.mxu0 0.0
    %356 = vmatpush1.msra.mxu0 0.0
    %357 = vmatprep.subr.mxu0 0.0
    %358 = vmatpush1.msra.mxu0 0.0
    %359 = vmatprep.subr.mxu0 0.0
    %360 = vmatpush1.msra.mxu0 0.0
    %361 = vmatprep.subr.mxu0 0.0
    %362 = vmatpush1.msra.mxu0 0.0
    %363 = vmatprep.subr.mxu0 0.0
    %364 = vmatpush1.msra.mxu0 0.0
    %365 = vmatprep.subr.mxu0 0.0
    %366 = vmatpush1.msra.mxu0 0.0
    %367 = vmatprep.subr.mxu0 0.0
    %368 = vmatpush1.msra.mxu0 0.0
    %369 = vmatprep.subr.mxu0 0.0
    %370 = vmatpush1.msra.mxu0 0.0
    %371 = vmatprep.subr.mxu0 0.0
    %372 = vmatpush1.msra.mxu0 0.0
    %373 = vmatprep.subr.mxu0 0.0
    %374 = vmatpush1.msra.mxu0 0.0
    %375 = vmatprep.subr.mxu0 0.0
    %376 = vmatpush1.msra.mxu0 0.0
    %377 = vmatprep.subr.mxu0 0.0
    %378 = vmatpush1.msra.mxu0 0.0
    %379 = vmatprep.subr.mxu0 0.0
    %380 = vmatpush1.msra.mxu0 0.0
    %381 = vmatprep.subr.mxu0 0.0
    %382 = vmatpush1.msra.mxu0 0.0
    %383 = vmatprep.subr.mxu0 0.0
    %384 = vmatpush1.msra.mxu0 0.0
    %385 = vmatprep.mubr.f32.mxu0 0.0
    %386 = vmatmul.mubr.f32.gmra.mrb[0].mxu0 %v319
    %v387 = vpop.f32.mrb[0].mxu0
    %v388 = vadd.f32 %v197, %v387
    %v389 = vpop.f32.mrb[0].mxu0
    %390 = vdwg.mxu0
    %v391 = vxor.u32 %v388, 2147483648
    %v392 = vmul.f32 %v391, 1.442695
    %v393 = vpow.pop %v392
    %v394 = vadd.f32 %v393, 1.0
    %v395 = vrcp.pop %v394
    %v396 = vmul.f32 1.0, %v395
    %v397 = vmul.f32 %v396, 2.0
    %v398 = vsub.f32 %v397, 1.0
    %400 = vrot.lane.b32.xlu0 %v201, 32
    %v401 = vpop.permute.xlu0 %400
    %v403 = vmul.f32 %v396, %v401
    %405 = vrot.lane.b32.xlu0 %v398, 64
    %v406 = vpop.permute.xlu0 %405
    %v408 = vmul.f32 %v396, %v406
    %410 = vrot.lane.b32.xlu0 %v408, 32
    %v411 = vpop.permute.xlu0 %410
    %v413 = vadd.f32 %v403, %v411
    %v414 = vtanh.pop %v413
    %416 = vrot.lane.b32.xlu0 %v414, 64
    %v417 = vpop.permute.xlu0 %416
    %v419 = vmul.f32 %v396, %v417
    %vm420 = vcmp.eq.s32.totalorder %v203, 0
    %v421 = vlaneseq
    %v422 = vshrl.u32 %v421, 7
    %v423 = vsub.s32 0, %v422
    %v424 = vrot.slane %v419, %v423
    %v425 = vsel %vm420, %v424, 0.0
    %v426 = vsel %vm204, %v310, 0
    %428 = vmatprep.subr.mxu0 0.0
    %429 = vmatpush1.msra.mxu0 %v185
    %430 = vmatprep.subr.mxu0 0.0
    %431 = vmatpush1.msra.mxu0 %v186
    %432 = vmatprep.subr.mxu0 0.0
    %433 = vmatpush1.msra.mxu0 %v187
    %434 = vmatprep.subr.mxu0 0.0
    %435 = vmatpush1.msra.mxu0 %v188
    %436 = vmatprep.subr.mxu0 0.0
    %437 = vmatpush1.msra.mxu0 0.0
    %438 = vmatprep.subr.mxu0 0.0
    %439 = vmatpush1.msra.mxu0 0.0
    %440 = vmatprep.subr.mxu0 0.0
    %441 = vmatpush1.msra.mxu0 0.0
    %442 = vmatprep.subr.mxu0 0.0
    %443 = vmatpush1.msra.mxu0 0.0
    %444 = vmatprep.subr.mxu0 0.0
    %445 = vmatpush1.msra.mxu0 0.0
    %446 = vmatprep.subr.mxu0 0.0
    %447 = vmatpush1.msra.mxu0 0.0
    %448 = vmatprep.subr.mxu0 0.0
    %449 = vmatpush1.msra.mxu0 0.0
    %450 = vmatprep.subr.mxu0 0.0
    %451 = vmatpush1.msra.mxu0 0.0
    %452 = vmatprep.subr.mxu0 0.0
    %453 = vmatpush1.msra.mxu0 0.0
    %454 = vmatprep.subr.mxu0 0.0
    %455 = vmatpush1.msra.mxu0 0.0
    %456 = vmatprep.subr.mxu0 0.0
    %457 = vmatpush1.msra.mxu0 0.0
    %458 = vmatprep.subr.mxu0 0.0
    %459 = vmatpush1.msra.mxu0 0.0
    %460 = vmatprep.subr.mxu0 0.0
    %461 = vmatpush1.msra.mxu0 0.0
    %462 = vmatprep.subr.mxu0 0.0
    %463 = vmatpush1.msra.mxu0 0.0
    %464 = vmatprep.subr.mxu0 0.0
    %465 = vmatpush1.msra.mxu0 0.0
    %466 = vmatprep.subr.mxu0 0.0
    %467 = vmatpush1.msra.mxu0 0.0
    %468 = vmatprep.subr.mxu0 0.0
    %469 = vmatpush1.msra.mxu0 0.0
    %470 = vmatprep.subr.mxu0 0.0
    %471 = vmatpush1.msra.mxu0 0.0
    %472 = vmatprep.subr.mxu0 0.0
    %473 = vmatpush1.msra.mxu0 0.0
    %474 = vmatprep.subr.mxu0 0.0
    %475 = vmatpush1.msra.mxu0 0.0
    %476 = vmatprep.subr.mxu0 0.0
    %477 = vmatpush1.msra.mxu0 0.0
    %478 = vmatprep.subr.mxu0 0.0
    %479 = vmatpush1.msra.mxu0 0.0
    %480 = vmatprep.subr.mxu0 0.0
    %481 = vmatpush1.msra.mxu0 0.0
    %482 = vmatprep.subr.mxu0 0.0
    %483 = vmatpush1.msra.mxu0 0.0
    %484 = vmatprep.subr.mxu0 0.0
    %485 = vmatpush1.msra.mxu0 0.0
    %486 = vmatprep.subr.mxu0 0.0
    %487 = vmatpush1.msra.mxu0 0.0
    %488 = vmatprep.subr.mxu0 0.0
    %489 = vmatpush1.msra.mxu0 0.0
    %490 = vmatprep.subr.mxu0 0.0
    %491 = vmatpush1.msra.mxu0 0.0
    %492 = vmatprep.mubr.f32.mxu0 0.0
    %493 = vmatmul.mubr.f32.gmra.mrb[0].mxu0 %v426
    %v494 = vpop.f32.mrb[0].mxu0
    %v495 = vadd.f32 0.0, %v494
    %v496 = vpop.f32.mrb[0].mxu0
    %497 = vdwg.mxu0
    %v499 = vrot.slane %v495, 7
    %v501 = vadd.f32 %v182, %v499
    %v502 = vxor.u32 %v501, 2147483648
    %v503 = vmul.f32 %v502, 1.442695
    %v504 = vpow.pop %v503
    %v505 = vadd.f32 %v504, 1.0
    %v506 = vrcp.pop %v505
    %v507 = vmul.f32 1.0, %v506
    %v508 = vmul.f32 %v507, 2.0
    %v509 = vsub.f32 %v508, 1.0
    %v511 = vrot.slane %v301, 7
    %v513 = vmul.f32 %v507, %v511
    %515 = vrot.lane.b32.xlu0 %v509, 64
    %v516 = vpop.permute.xlu0 %515
    %v518 = vmul.f32 %v507, %v516
    %520 = vrot.lane.b32.xlu0 %v518, 32
    %v521 = vpop.permute.xlu0 %520
    %v523 = vadd.f32 %v513, %v521
    %v524 = vtanh.pop %v523
    %526 = vrot.lane.b32.xlu0 %v524, 64
    %v527 = vpop.permute.xlu0 %526
    %v529 = vmul.f32 %v507, %v527
    %531 = vrot.lane.b32.xlu0 %v529, 32
    %v532 = vpop.permute.xlu0 %531
    %v535 = vrot.slane %v419, 7
    %536 = vrot.lane.b32.xlu0 %v535, 64
    %v537 = vpop.permute.xlu0 %536
    %v539 = vsel %vm204, %v532, %v537
    %v541 = vrot.slane %v539, 1
    %v542 = vsel %vm317, %v541, 0
    %544 = vmatprep.subr.mxu0 0.0
    %545 = vmatpush1.msra.mxu0 %v189
    %546 = vmatprep.subr.mxu0 0.0
    %547 = vmatpush1.msra.mxu0 %v190
    %548 = vmatprep.subr.mxu0 0.0
    %549 = vmatpush1.msra.mxu0 %v191
    %550 = vmatprep.subr.mxu0 0.0
    %551 = vmatpush1.msra.mxu0 %v192
    %552 = vmatprep.subr.mxu0 0.0
    %553 = vmatpush1.msra.mxu0 %v193
    %554 = vmatprep.subr.mxu0 0.0
    %555 = vmatpush1.msra.mxu0 %v194
    %556 = vmatprep.subr.mxu0 0.0
    %557 = vmatpush1.msra.mxu0 %v195
    %558 = vmatprep.subr.mxu0 0.0
    %559 = vmatpush1.msra.mxu0 %v196
    %560 = vmatprep.subr.mxu0 0.0
    %561 = vmatpush1.msra.mxu0 0.0
    %562 = vmatprep.subr.mxu0 0.0
    %563 = vmatpush1.msra.mxu0 0.0
    %564 = vmatprep.subr.mxu0 0.0
    %565 = vmatpush1.msra.mxu0 0.0
    %566 = vmatprep.subr.mxu0 0.0
    %567 = vmatpush1.msra.mxu0 0.0
    %568 = vmatprep.subr.mxu0 0.0
    %569 = vmatpush1.msra.mxu0 0.0
    %570 = vmatprep.subr.mxu0 0.0
    %571 = vmatpush1.msra.mxu0 0.0
    %572 = vmatprep.subr.mxu0 0.0
    %573 = vmatpush1.msra.mxu0 0.0
    %574 = vmatprep.subr.mxu0 0.0
    %575 = vmatpush1.msra.mxu0 0.0
    %576 = vmatprep.subr.mxu0 0.0
    %577 = vmatpush1.msra.mxu0 0.0
    %578 = vmatprep.subr.mxu0 0.0
    %579 = vmatpush1.msra.mxu0 0.0
    %580 = vmatprep.subr.mxu0 0.0
    %581 = vmatpush1.msra.mxu0 0.0
    %582 = vmatprep.subr.mxu0 0.0
    %583 = vmatpush1.msra.mxu0 0.0
    %584 = vmatprep.subr.mxu0 0.0
    %585 = vmatpush1.msra.mxu0 0.0
    %586 = vmatprep.subr.mxu0 0.0
    %587 = vmatpush1.msra.mxu0 0.0
    %588 = vmatprep.subr.mxu0 0.0
    %589 = vmatpush1.msra.mxu0 0.0
    %590 = vmatprep.subr.mxu0 0.0
    %591 = vmatpush1.msra.mxu0 0.0
    %592 = vmatprep.subr.mxu0 0.0
    %593 = vmatpush1.msra.mxu0 0.0
    %594 = vmatprep.subr.mxu0 0.0
    %595 = vmatpush1.msra.mxu0 0.0
    %596 = vmatprep.subr.mxu0 0.0
    %597 = vmatpush1.msra.mxu0 0.0
    %598 = vmatprep.subr.mxu0 0.0
    %599 = vmatpush1.msra.mxu0 0.0
    %600 = vmatprep.subr.mxu0 0.0
    %601 = vmatpush1.msra.mxu0 0.0
    %602 = vmatprep.subr.mxu0 0.0
    %603 = vmatpush1.msra.mxu0 0.0
    %604 = vmatprep.subr.mxu0 0.0
    %605 = vmatpush1.msra.mxu0 0.0
    %606 = vmatprep.subr.mxu0 0.0
    %607 = vmatpush1.msra.mxu0 0.0
    %608 = vmatprep.mubr.f32.mxu0 0.0
    %609 = vmatmul.mubr.f32.gmra.mrb[0].mxu0 %v542
    %v610 = vpop.f32.mrb[0].mxu0
    %v611 = vadd.f32 %v197, %v610
    %v612 = vpop.f32.mrb[0].mxu0
    %613 = vdwg.mxu0
    %v614 = vxor.u32 %v611, 2147483648
    %v615 = vmul.f32 %v614, 1.442695
    %v616 = vpow.pop %v615
    %v617 = vadd.f32 %v616, 1.0
    %v618 = vrcp.pop %v617
    %v619 = vmul.f32 1.0, %v618
    %v620 = vmul.f32 %v619, 2.0
    %v621 = vsub.f32 %v620, 1.0
    %v622 = vmul.f32 %v619, %v413
    %624 = vrot.lane.b32.xlu0 %v621, 64
    %v625 = vpop.permute.xlu0 %624
    %v627 = vmul.f32 %v619, %v625
    %629 = vrot.lane.b32.xlu0 %v627, 32
    %v630 = vpop.permute.xlu0 %629
    %v632 = vadd.f32 %v622, %v630
    %v633 = vtanh.pop %v632
    %635 = vrot.lane.b32.xlu0 %v633, 64
    %v636 = vpop.permute.xlu0 %635
    %v638 = vmul.f32 %v619, %v636
    %vm639 = vcmp.eq.s32.totalorder %v203, 1
    %v640 = vlaneseq
    %v641 = vshrl.u32 %v640, 7
    %v642 = vsub.s32 0, %v641
    %v643 = vrot.slane %v638, %v642
    %v644 = vsel %vm639, %v643, %v425
    %v645 = vrot.slane %v529, 1
    %646 = vrot.lane.b32.xlu0 %v645, 32
    %v647 = vpop.permute.xlu0 %646
    %v648 = vsel %vm204, %v647, 0
    %650 = vmatprep.subr.mxu0 0.0
    %651 = vmatpush1.msra.mxu0 %v185
    %652 = vmatprep.subr.mxu0 0.0
    %653 = vmatpush1.msra.mxu0 %v186
    %654 = vmatprep.subr.mxu0 0.0
    %655 = vmatpush1.msra.mxu0 %v187
    %656 = vmatprep.subr.mxu0 0.0
    %657 = vmatpush1.msra.mxu0 %v188
    %658 = vmatprep.subr.mxu0 0.0
    %659 = vmatpush1.msra.mxu0 0.0
    %660 = vmatprep.subr.mxu0 0.0
    %661 = vmatpush1.msra.mxu0 0.0
    %662 = vmatprep.subr.mxu0 0.0
    %663 = vmatpush1.msra.mxu0 0.0
    %664 = vmatprep.subr.mxu0 0.0
    %665 = vmatpush1.msra.mxu0 0.0
    %666 = vmatprep.subr.mxu0 0.0
    %667 = vmatpush1.msra.mxu0 0.0
    %668 = vmatprep.subr.mxu0 0.0
    %669 = vmatpush1.msra.mxu0 0.0
    %670 = vmatprep.subr.mxu0 0.0
    %671 = vmatpush1.msra.mxu0 0.0
    %672 = vmatprep.subr.mxu0 0.0
    %673 = vmatpush1.msra.mxu0 0.0
    %674 = vmatprep.subr.mxu0 0.0
    %675 = vmatpush1.msra.mxu0 0.0
    %676 = vmatprep.subr.mxu0 0.0
    %677 = vmatpush1.msra.mxu0 0.0
    %678 = vmatprep.subr.mxu0 0.0
    %679 = vmatpush1.msra.mxu0 0.0
    %680 = vmatprep.subr.mxu0 0.0
    %681 = vmatpush1.msra.mxu0 0.0
    %682 = vmatprep.subr.mxu0 0.0
    %683 = vmatpush1.msra.mxu0 0.0
    %684 = vmatprep.subr.mxu0 0.0
    %685 = vmatpush1.msra.mxu0 0.0
    %686 = vmatprep.subr.mxu0 0.0
    %687 = vmatpush1.msra.mxu0 0.0
    %688 = vmatprep.subr.mxu0 0.0
    %689 = vmatpush1.msra.mxu0 0.0
    %690 = vmatprep.subr.mxu0 0.0
    %691 = vmatpush1.msra.mxu0 0.0
    %692 = vmatprep.subr.mxu0 0.0
    %693 = vmatpush1.msra.mxu0 0.0
    %694 = vmatprep.subr.mxu0 0.0
    %695 = vmatpush1.msra.mxu0 0.0
    %696 = vmatprep.subr.mxu0 0.0
    %697 = vmatpush1.msra.mxu0 0.0
    %698 = vmatprep.subr.mxu0 0.0
    %699 = vmatpush1.msra.mxu0 0.0
    %700 = vmatprep.subr.mxu0 0.0
    %701 = vmatpush1.msra.mxu0 0.0
    %702 = vmatprep.subr.mxu0 0.0
    %703 = vmatpush1.msra.mxu0 0.0
    %704 = vmatprep.subr.mxu0 0.0
    %705 = vmatpush1.msra.mxu0 0.0
    %706 = vmatprep.subr.mxu0 0.0
    %707 = vmatpush1.msra.mxu0 0.0
    %708 = vmatprep.subr.mxu0 0.0
    %709 = vmatpush1.msra.mxu0 0.0
    %710 = vmatprep.subr.mxu0 0.0
    %711 = vmatpush1.msra.mxu0 0.0
    %712 = vmatprep.subr.mxu0 0.0
    %713 = vmatpush1.msra.mxu0 0.0
    %714 = vmatprep.mubr.f32.mxu0 0.0
    %715 = vmatmul.mubr.f32.gmra.mrb[0].mxu0 %v648
    %v716 = vpop.f32.mrb[0].mxu0
    %v717 = vadd.f32 0.0, %v716
    %v718 = vpop.f32.mrb[0].mxu0
    %719 = vdwg.mxu0
    %v721 = vrot.slane %v717, 6
    %v723 = vadd.f32 %v182, %v721
    %v724 = vxor.u32 %v723, 2147483648
    %v725 = vmul.f32 %v724, 1.442695
    %v726 = vpow.pop %v725
    %v727 = vadd.f32 %v726, 1.0
    %v728 = vrcp.pop %v727
    %v729 = vmul.f32 1.0, %v728
    %v730 = vmul.f32 %v729, 2.0
    %v731 = vsub.f32 %v730, 1.0
    %v733 = vrot.slane %v523, 7
    %v735 = vmul.f32 %v729, %v733
    %737 = vrot.lane.b32.xlu0 %v731, 64
    %v738 = vpop.permute.xlu0 %737
    %v740 = vmul.f32 %v729, %v738
    %742 = vrot.lane.b32.xlu0 %v740, 32
    %v743 = vpop.permute.xlu0 %742
    %v745 = vadd.f32 %v735, %v743
    %v746 = vtanh.pop %v745
    %748 = vrot.lane.b32.xlu0 %v746, 64
    %v749 = vpop.permute.xlu0 %748
    %v751 = vmul.f32 %v729, %v749
    %753 = vrot.lane.b32.xlu0 %v751, 32
    %v754 = vpop.permute.xlu0 %753
    %v757 = vrot.slane %v638, 6
    %758 = vrot.lane.b32.xlu0 %v757, 64
    %v759 = vpop.permute.xlu0 %758
    %v761 = vsel %vm204, %v754, %v759
    %v763 = vrot.slane %v761, 2
    %v764 = vsel %vm317, %v763, 0
    %766 = vmatprep.subr.mxu0 0.0
    %767 = vmatpush1.msra.mxu0 %v189
    %768 = vmatprep.subr.mxu0 0.0
    %769 = vmatpush1.msra.mxu0 %v190
    %770 = vmatprep.subr.mxu0 0.0
    %771 = vmatpush1.msra.mxu0 %v191
    %772 = vmatprep.subr.mxu0 0.0
    %773 = vmatpush1.msra.mxu0 %v192
    %774 = vmatprep.subr.mxu0 0.0
    %775 = vmatpush1.msra.mxu0 %v193
    %776 = vmatprep.subr.mxu0 0.0
    %777 = vmatpush1.msra.mxu0 %v194
    %778 = vmatprep.subr.mxu0 0.0
    %779 = vmatpush1.msra.mxu0 %v195
    %780 = vmatprep.subr.mxu0 0.0
    %781 = vmatpush1.msra.mxu0 %v196
    %782 = vmatprep.subr.mxu0 0.0
    %783 = vmatpush1.msra.mxu0 0.0
    %784 = vmatprep.subr.mxu0 0.0
    %785 = vmatpush1.msra.mxu0 0.0
    %786 = vmatprep.subr.mxu0 0.0
    %787 = vmatpush1.msra.mxu0 0.0
    %788 = vmatprep.subr.mxu0 0.0
    %789 = vmatpush1.msra.mxu0 0.0
    %790 = vmatprep.subr.mxu0 0.0
    %791 = vmatpush1.msra.mxu0 0.0
    %792 = vmatprep.subr.mxu0 0.0
    %793 = vmatpush1.msra.mxu0 0.0
    %794 = vmatprep.subr.mxu0 0.0
    %795 = vmatpush1.msra.mxu0 0.0
    %796 = vmatprep.subr.mxu0 0.0
    %797 = vmatpush1.msra.mxu0 0.0
    %798 = vmatprep.subr.mxu0 0.0
    %799 = vmatpush1.msra.mxu0 0.0
    %800 = vmatprep.subr.mxu0 0.0
    %801 = vmatpush1.msra.mxu0 0.0
    %802 = vmatprep.subr.mxu0 0.0
    %803 = vmatpush1.msra.mxu0 0.0
    %804 = vmatprep.subr.mxu0 0.0
    %805 = vmatpush1.msra.mxu0 0.0
    %806 = vmatprep.subr.mxu0 0.0
    %807 = vmatpush1.msra.mxu0 0.0
    %808 = vmatprep.subr.mxu0 0.0
    %809 = vmatpush1.msra.mxu0 0.0
    %810 = vmatprep.subr.mxu0 0.0
    %811 = vmatpush1.msra.mxu0 0.0
    %812 = vmatprep.subr.mxu0 0.0
    %813 = vmatpush1.msra.mxu0 0.0
    %814 = vmatprep.subr.mxu0 0.0
    %815 = vmatpush1.msra.mxu0 0.0
    %816 = vmatprep.subr.mxu0 0.0
    %817 = vmatpush1.msra.mxu0 0.0
    %818 = vmatprep.subr.mxu0 0.0
    %819 = vmatpush1.msra.mxu0 0.0
    %820 = vmatprep.subr.mxu0 0.0
    %821 = vmatpush1.msra.mxu0 0.0
    %822 = vmatprep.subr.mxu0 0.0
    %823 = vmatpush1.msra.mxu0 0.0
    %824 = vmatprep.subr.mxu0 0.0
    %825 = vmatpush1.msra.mxu0 0.0
    %826 = vmatprep.subr.mxu0 0.0
    %827 = vmatpush1.msra.mxu0 0.0
    %828 = vmatprep.subr.mxu0 0.0
    %829 = vmatpush1.msra.mxu0 0.0
    %830 = vmatprep.mubr.f32.mxu0 0.0
    %831 = vmatmul.mubr.f32.gmra.mrb[0].mxu0 %v764
    %v832 = vpop.f32.mrb[0].mxu0
    %v833 = vadd.f32 %v197, %v832
    %v834 = vpop.f32.mrb[0].mxu0
    %835 = vdwg.mxu0
    %v836 = vxor.u32 %v833, 2147483648
    %v837 = vmul.f32 %v836, 1.442695
    %v838 = vpow.pop %v837
    %v839 = vadd.f32 %v838, 1.0
    %v840 = vrcp.pop %v839
    %v841 = vmul.f32 1.0, %v840
    %v842 = vmul.f32 %v841, 2.0
    %v843 = vsub.f32 %v842, 1.0
    %v844 = vmul.f32 %v841, %v632
    %846 = vrot.lane.b32.xlu0 %v843, 64
    %v847 = vpop.permute.xlu0 %846
    %v849 = vmul.f32 %v841, %v847
    %851 = vrot.lane.b32.xlu0 %v849, 32
    %v852 = vpop.permute.xlu0 %851
    %v854 = vadd.f32 %v844, %v852
    %v855 = vtanh.pop %v854
    %857 = vrot.lane.b32.xlu0 %v855, 64
    %v858 = vpop.permute.xlu0 %857
    %v860 = vmul.f32 %v841, %v858
    %vm861 = vcmp.eq.s32.totalorder %v203, 2
    %v862 = vlaneseq
    %v863 = vshrl.u32 %v862, 7
    %v864 = vsub.s32 0, %v863
    %v865 = vrot.slane %v860, %v864
    %v866 = vsel %vm861, %v865, %v644
    %v867 = vrot.slane %v751, 2
    %868 = vrot.lane.b32.xlu0 %v867, 32
    %v869 = vpop.permute.xlu0 %868
    %v870 = vsel %vm204, %v869, 0
    %872 = vmatprep.subr.mxu0 0.0
    %873 = vmatpush1.msra.mxu0 %v185
    %874 = vmatprep.subr.mxu0 0.0
    %875 = vmatpush1.msra.mxu0 %v186
    %876 = vmatprep.subr.mxu0 0.0
    %877 = vmatpush1.msra.mxu0 %v187
    %878 = vmatprep.subr.mxu0 0.0
    %879 = vmatpush1.msra.mxu0 %v188
    %880 = vmatprep.subr.mxu0 0.0
    %881 = vmatpush1.msra.mxu0 0.0
    %882 = vmatprep.subr.mxu0 0.0
    %883 = vmatpush1.msra.mxu0 0.0
    %884 = vmatprep.subr.mxu0 0.0
    %885 = vmatpush1.msra.mxu0 0.0
    %886 = vmatprep.subr.mxu0 0.0
    %887 = vmatpush1.msra.mxu0 0.0
    %888 = vmatprep.subr.mxu0 0.0
    %889 = vmatpush1.msra.mxu0 0.0
    %890 = vmatprep.subr.mxu0 0.0
    %891 = vmatpush1.msra.mxu0 0.0
    %892 = vmatprep.subr.mxu0 0.0
    %893 = vmatpush1.msra.mxu0 0.0
    %894 = vmatprep.subr.mxu0 0.0
    %895 = vmatpush1.msra.mxu0 0.0
    %896 = vmatprep.subr.mxu0 0.0
    %897 = vmatpush1.msra.mxu0 0.0
    %898 = vmatprep.subr.mxu0 0.0
    %899 = vmatpush1.msra.mxu0 0.0
    %900 = vmatprep.subr.mxu0 0.0
    %901 = vmatpush1.msra.mxu0 0.0
    %902 = vmatprep.subr.mxu0 0.0
    %903 = vmatpush1.msra.mxu0 0.0
    %904 = vmatprep.subr.mxu0 0.0
    %905 = vmatpush1.msra.mxu0 0.0
    %906 = vmatprep.subr.mxu0 0.0
    %907 = vmatpush1.msra.mxu0 0.0
    %908 = vmatprep.subr.mxu0 0.0
    %909 = vmatpush1.msra.mxu0 0.0
    %910 = vmatprep.subr.mxu0 0.0
    %911 = vmatpush1.msra.mxu0 0.0
    %912 = vmatprep.subr.mxu0 0.0
    %913 = vmatpush1.msra.mxu0 0.0
    %914 = vmatprep.subr.mxu0 0.0
    %915 = vmatpush1.msra.mxu0 0.0
    %916 = vmatprep.subr.mxu0 0.0
    %917 = vmatpush1.msra.mxu0 0.0
    %918 = vmatprep.subr.mxu0 0.0
    %919 = vmatpush1.msra.mxu0 0.0
    %920 = vmatprep.subr.mxu0 0.0
    %921 = vmatpush1.msra.mxu0 0.0
    %922 = vmatprep.subr.mxu0 0.0
    %923 = vmatpush1.msra.mxu0 0.0
    %924 = vmatprep.subr.mxu0 0.0
    %925 = vmatpush1.msra.mxu0 0.0
    %926 = vmatprep.subr.mxu0 0.0
    %927 = vmatpush1.msra.mxu0 0.0
    %928 = vmatprep.subr.mxu0 0.0
    %929 = vmatpush1.msra.mxu0 0.0
    %930 = vmatprep.subr.mxu0 0.0
    %931 = vmatpush1.msra.mxu0 0.0
    %932 = vmatprep.subr.mxu0 0.0
    %933 = vmatpush1.msra.mxu0 0.0
    %934 = vmatprep.subr.mxu0 0.0
    %935 = vmatpush1.msra.mxu0 0.0
    %936 = vmatprep.mubr.f32.mxu0 0.0
    %937 = vmatmul.mubr.f32.gmra.mrb[0].mxu0 %v870
    %v938 = vpop.f32.mrb[0].mxu0
    %v939 = vadd.f32 0.0, %v938
    %v940 = vpop.f32.mrb[0].mxu0
    %941 = vdwg.mxu0
    %v943 = vrot.slane %v939, 5
    %v945 = vadd.f32 %v182, %v943
    %v946 = vxor.u32 %v945, 2147483648
    %v947 = vmul.f32 %v946, 1.442695
    %v948 = vpow.pop %v947
    %v949 = vadd.f32 %v948, 1.0
    %v950 = vrcp.pop %v949
    %v951 = vmul.f32 1.0, %v950
    %v952 = vmul.f32 %v951, 2.0
    %v953 = vsub.f32 %v952, 1.0
    %v955 = vrot.slane %v745, 7
    %v957 = vmul.f32 %v951, %v955
    %959 = vrot.lane.b32.xlu0 %v953, 64
    %v960 = vpop.permute.xlu0 %959
    %v962 = vmul.f32 %v951, %v960
    %964 = vrot.lane.b32.xlu0 %v962, 32
    %v965 = vpop.permute.xlu0 %964
    %v967 = vadd.f32 %v957, %v965
    %v968 = vtanh.pop %v967
    %970 = vrot.lane.b32.xlu0 %v968, 64
    %v971 = vpop.permute.xlu0 %970
    %v973 = vmul.f32 %v951, %v971
    %975 = vrot.lane.b32.xlu0 %v973, 32
    %v976 = vpop.permute.xlu0 %975
    %v979 = vrot.slane %v860, 5
    %980 = vrot.lane.b32.xlu0 %v979, 64
    %v981 = vpop.permute.xlu0 %980
    %v983 = vsel %vm204, %v976, %v981
    %v985 = vrot.slane %v983, 3
    %v986 = vsel %vm317, %v985, 0
    %988 = vmatprep.subr.mxu0 0.0
    %989 = vmatpush1.msra.mxu0 %v189
    %990 = vmatprep.subr.mxu0 0.0
    %991 = vmatpush1.msra.mxu0 %v190
    %992 = vmatprep.subr.mxu0 0.0
    %993 = vmatpush1.msra.mxu0 %v191
    %994 = vmatprep.subr.mxu0 0.0
    %995 = vmatpush1.msra.mxu0 %v192
    %996 = vmatprep.subr.mxu0 0.0
    %997 = vmatpush1.msra.mxu0 %v193
    %998 = vmatprep.subr.mxu0 0.0
    %999 = vmatpush1.msra.mxu0 %v194
    %1000 = vmatprep.subr.mxu0 0.0
    %1001 = vmatpush1.msra.mxu0 %v195
    %1002 = vmatprep.subr.mxu0 0.0
    %1003 = vmatpush1.msra.mxu0 %v196
    %1004 = vmatprep.subr.mxu0 0.0
    %1005 = vmatpush1.msra.mxu0 0.0
    %1006 = vmatprep.subr.mxu0 0.0
    %1007 = vmatpush1.msra.mxu0 0.0
    %1008 = vmatprep.subr.mxu0 0.0
    %1009 = vmatpush1.msra.mxu0 0.0
    %1010 = vmatprep.subr.mxu0 0.0
    %1011 = vmatpush1.msra.mxu0 0.0
    %1012 = vmatprep.subr.mxu0 0.0
    %1013 = vmatpush1.msra.mxu0 0.0
    %1014 = vmatprep.subr.mxu0 0.0
    %1015 = vmatpush1.msra.mxu0 0.0
    %1016 = vmatprep.subr.mxu0 0.0
    %1017 = vmatpush1.msra.mxu0 0.0
    %1018 = vmatprep.subr.mxu0 0.0
    %1019 = vmatpush1.msra.mxu0 0.0
    %1020 = vmatprep.subr.mxu0 0.0
    %1021 = vmatpush1.msra.mxu0 0.0
    %1022 = vmatprep.subr.mxu0 0.0
    %1023 = vmatpush1.msra.mxu0 0.0
    %1024 = vmatprep.subr.mxu0 0.0
    %1025 = vmatpush1.msra.mxu0 0.0
    %1026 = vmatprep.subr.mxu0 0.0
    %1027 = vmatpush1.msra.mxu0 0.0
    %1028 = vmatprep.subr.mxu0 0.0
    %1029 = vmatpush1.msra.mxu0 0.0
    %1030 = vmatprep.subr.mxu0 0.0
    %1031 = vmatpush1.msra.mxu0 0.0
    %1032 = vmatprep.subr.mxu0 0.0
    %1033 = vmatpush1.msra.mxu0 0.0
    %1034 = vmatprep.subr.mxu0 0.0
    %1035 = vmatpush1.msra.mxu0 0.0
    %1036 = vmatprep.subr.mxu0 0.0
    %1037 = vmatpush1.msra.mxu0 0.0
    %1038 = vmatprep.subr.mxu0 0.0
    %1039 = vmatpush1.msra.mxu0 0.0
    %1040 = vmatprep.subr.mxu0 0.0
    %1041 = vmatpush1.msra.mxu0 0.0
    %1042 = vmatprep.subr.mxu0 0.0
    %1043 = vmatpush1.msra.mxu0 0.0
    %1044 = vmatprep.subr.mxu0 0.0
    %1045 = vmatpush1.msra.mxu0 0.0
    %1046 = vmatprep.subr.mxu0 0.0
    %1047 = vmatpush1.msra.mxu0 0.0
    %1048 = vmatprep.subr.mxu0 0.0
    %1049 = vmatpush1.msra.mxu0 0.0
    %1050 = vmatprep.subr.mxu0 0.0
    %1051 = vmatpush1.msra.mxu0 0.0
    %1052 = vmatprep.mubr.f32.mxu0 0.0
    %1053 = vmatmul.mubr.f32.gmra.mrb[0].mxu0 %v986
    %v1054 = vpop.f32.mrb[0].mxu0
    %v1055 = vadd.f32 %v197, %v1054
    %v1056 = vpop.f32.mrb[0].mxu0
    %1057 = vdwg.mxu0
    %v1058 = vxor.u32 %v1055, 2147483648
    %v1059 = vmul.f32 %v1058, 1.442695
    %v1060 = vpow.pop %v1059
    %v1061 = vadd.f32 %v1060, 1.0
    %v1062 = vrcp.pop %v1061
    %v1063 = vmul.f32 1.0, %v1062
    %v1064 = vmul.f32 %v1063, 2.0
    %v1065 = vsub.f32 %v1064, 1.0
    %v1066 = vmul.f32 %v1063, %v854
    %1068 = vrot.lane.b32.xlu0 %v1065, 64
    %v1069 = vpop.permute.xlu0 %1068
    %v1071 = vmul.f32 %v1063, %v1069
    %1073 = vrot.lane.b32.xlu0 %v1071, 32
    %v1074 = vpop.permute.xlu0 %1073
    %v1076 = vadd.f32 %v1066, %v1074
    %v1077 = vtanh.pop %v1076
    %1079 = vrot.lane.b32.xlu0 %v1077, 64
    %v1080 = vpop.permute.xlu0 %1079
    %v1082 = vmul.f32 %v1063, %v1080
    %vm1083 = vcmp.eq.s32.totalorder %v203, 3
    %v1084 = vlaneseq
    %v1085 = vshrl.u32 %v1084, 7
    %v1086 = vsub.s32 0, %v1085
    %v1087 = vrot.slane %v1082, %v1086
    %v1088 = vsel %vm1083, %v1087, %v866
    %v1089 = vrot.slane %v973, 3
    %1090 = vrot.lane.b32.xlu0 %v1089, 32
    %v1091 = vpop.permute.xlu0 %1090
    %v1092 = vsel %vm204, %v1091, 0
    %1094 = vmatprep.subr.mxu0 0.0
    %1095 = vmatpush1.msra.mxu0 %v185
    %1096 = vmatprep.subr.mxu0 0.0
    %1097 = vmatpush1.msra.mxu0 %v186
    %1098 = vmatprep.subr.mxu0 0.0
    %1099 = vmatpush1.msra.mxu0 %v187
    %1100 = vmatprep.subr.mxu0 0.0
    %1101 = vmatpush1.msra.mxu0 %v188
    %1102 = vmatprep.subr.mxu0 0.0
    %1103 = vmatpush1.msra.mxu0 0.0
    %1104 = vmatprep.subr.mxu0 0.0
    %1105 = vmatpush1.msra.mxu0 0.0
    %1106 = vmatprep.subr.mxu0 0.0
    %1107 = vmatpush1.msra.mxu0 0.0
    %1108 = vmatprep.subr.mxu0 0.0
    %1109 = vmatpush1.msra.mxu0 0.0
    %1110 = vmatprep.subr.mxu0 0.0
    %1111 = vmatpush1.msra.mxu0 0.0
    %1112 = vmatprep.subr.mxu0 0.0
    %1113 = vmatpush1.msra.mxu0 0.0
    %1114 = vmatprep.subr.mxu0 0.0
    %1115 = vmatpush1.msra.mxu0 0.0
    %1116 = vmatprep.subr.mxu0 0.0
    %1117 = vmatpush1.msra.mxu0 0.0
    %1118 = vmatprep.subr.mxu0 0.0
    %1119 = vmatpush1.msra.mxu0 0.0
    %1120 = vmatprep.subr.mxu0 0.0
    %1121 = vmatpush1.msra.mxu0 0.0
    %1122 = vmatprep.subr.mxu0 0.0
    %1123 = vmatpush1.msra.mxu0 0.0
    %1124 = vmatprep.subr.mxu0 0.0
    %1125 = vmatpush1.msra.mxu0 0.0
    %1126 = vmatprep.subr.mxu0 0.0
    %1127 = vmatpush1.msra.mxu0 0.0
    %1128 = vmatprep.subr.mxu0 0.0
    %1129 = vmatpush1.msra.mxu0 0.0
    %1130 = vmatprep.subr.mxu0 0.0
    %1131 = vmatpush1.msra.mxu0 0.0
    %1132 = vmatprep.subr.mxu0 0.0
    %1133 = vmatpush1.msra.mxu0 0.0
    %1134 = vmatprep.subr.mxu0 0.0
    %1135 = vmatpush1.msra.mxu0 0.0
    %1136 = vmatprep.subr.mxu0 0.0
    %1137 = vmatpush1.msra.mxu0 0.0
    %1138 = vmatprep.subr.mxu0 0.0
    %1139 = vmatpush1.msra.mxu0 0.0
    %1140 = vmatprep.subr.mxu0 0.0
    %1141 = vmatpush1.msra.mxu0 0.0
    %1142 = vmatprep.subr.mxu0 0.0
    %1143 = vmatpush1.msra.mxu0 0.0
    %1144 = vmatprep.subr.mxu0 0.0
    %1145 = vmatpush1.msra.mxu0 0.0
    %1146 = vmatprep.subr.mxu0 0.0
    %1147 = vmatpush1.msra.mxu0 0.0
    %1148 = vmatprep.subr.mxu0 0.0
    %1149 = vmatpush1.msra.mxu0 0.0
    %1150 = vmatprep.subr.mxu0 0.0
    %1151 = vmatpush1.msra.mxu0 0.0
    %1152 = vmatprep.subr.mxu0 0.0
    %1153 = vmatpush1.msra.mxu0 0.0
    %1154 = vmatprep.subr.mxu0 0.0
    %1155 = vmatpush1.msra.mxu0 0.0
    %1156 = vmatprep.subr.mxu0 0.0
    %1157 = vmatpush1.msra.mxu0 0.0
    %1158 = vmatprep.mubr.f32.mxu0 0.0
    %1159 = vmatmul.mubr.f32.gmra.mrb[0].mxu0 %v1092
    %v1160 = vpop.f32.mrb[0].mxu0
    %v1161 = vadd.f32 0.0, %v1160
    %v1162 = vpop.f32.mrb[0].mxu0
    %1163 = vdwg.mxu0
    %v1165 = vrot.slane %v1161, 4
    %v1167 = vadd.f32 %v182, %v1165
    %v1168 = vxor.u32 %v1167, 2147483648
    %v1169 = vmul.f32 %v1168, 1.442695
    %v1170 = vpow.pop %v1169
    %v1171 = vadd.f32 %v1170, 1.0
    %v1172 = vrcp.pop %v1171
    %v1173 = vmul.f32 1.0, %v1172
    %v1174 = vmul.f32 %v1173, 2.0
    %v1175 = vsub.f32 %v1174, 1.0
    %v1177 = vrot.slane %v967, 7
    %v1179 = vmul.f32 %v1173, %v1177
    %1181 = vrot.lane.b32.xlu0 %v1175, 64
    %v1182 = vpop.permute.xlu0 %1181
    %v1184 = vmul.f32 %v1173, %v1182
    %1186 = vrot.lane.b32.xlu0 %v1184, 32
    %v1187 = vpop.permute.xlu0 %1186
    %v1189 = vadd.f32 %v1179, %v1187
    %v1190 = vtanh.pop %v1189
    %1192 = vrot.lane.b32.xlu0 %v1190, 64
    %v1193 = vpop.permute.xlu0 %1192
    %v1195 = vmul.f32 %v1173, %v1193
    %1197 = vrot.lane.b32.xlu0 %v1195, 32
    %v1198 = vpop.permute.xlu0 %1197
    %v1201 = vrot.slane %v1082, 4
    %1202 = vrot.lane.b32.xlu0 %v1201, 64
    %v1203 = vpop.permute.xlu0 %1202
    %v1205 = vsel %vm204, %v1198, %v1203
    %v1207 = vrot.slane %v1205, 4
    %v1208 = vsel %vm317, %v1207, 0
    %1210 = vmatprep.subr.mxu0 0.0
    %1211 = vmatpush1.msra.mxu0 %v189
    %1212 = vmatprep.subr.mxu0 0.0
    %1213 = vmatpush1.msra.mxu0 %v190
    %1214 = vmatprep.subr.mxu0 0.0
    %1215 = vmatpush1.msra.mxu0 %v191
    %1216 = vmatprep.subr.mxu0 0.0
    %1217 = vmatpush1.msra.mxu0 %v192
    %1218 = vmatprep.subr.mxu0 0.0
    %1219 = vmatpush1.msra.mxu0 %v193
    %1220 = vmatprep.subr.mxu0 0.0
    %1221 = vmatpush1.msra.mxu0 %v194
    %1222 = vmatprep.subr.mxu0 0.0
    %1223 = vmatpush1.msra.mxu0 %v195
    %1224 = vmatprep.subr.mxu0 0.0
    %1225 = vmatpush1.msra.mxu0 %v196
    %1226 = vmatprep.subr.mxu0 0.0
    %1227 = vmatpush1.msra.mxu0 0.0
    %1228 = vmatprep.subr.mxu0 0.0
    %1229 = vmatpush1.msra.mxu0 0.0
    %1230 = vmatprep.subr.mxu0 0.0
    %1231 = vmatpush1.msra.mxu0 0.0
    %1232 = vmatprep.subr.mxu0 0.0
    %1233 = vmatpush1.msra.mxu0 0.0
    %1234 = vmatprep.subr.mxu0 0.0
    %1235 = vmatpush1.msra.mxu0 0.0
    %1236 = vmatprep.subr.mxu0 0.0
    %1237 = vmatpush1.msra.mxu0 0.0
    %1238 = vmatprep.subr.mxu0 0.0
    %1239 = vmatpush1.msra.mxu0 0.0
    %1240 = vmatprep.subr.mxu0 0.0
    %1241 = vmatpush1.msra.mxu0 0.0
    %1242 = vmatprep.subr.mxu0 0.0
    %1243 = vmatpush1.msra.mxu0 0.0
    %1244 = vmatprep.subr.mxu0 0.0
    %1245 = vmatpush1.msra.mxu0 0.0
    %1246 = vmatprep.subr.mxu0 0.0
    %1247 = vmatpush1.msra.mxu0 0.0
    %1248 = vmatprep.subr.mxu0 0.0
    %1249 = vmatpush1.msra.mxu0 0.0
    %1250 = vmatprep.subr.mxu0 0.0
    %1251 = vmatpush1.msra.mxu0 0.0
    %1252 = vmatprep.subr.mxu0 0.0
    %1253 = vmatpush1.msra.mxu0 0.0
    %1254 = vmatprep.subr.mxu0 0.0
    %1255 = vmatpush1.msra.mxu0 0.0
    %1256 = vmatprep.subr.mxu0 0.0
    %1257 = vmatpush1.msra.mxu0 0.0
    %1258 = vmatprep.subr.mxu0 0.0
    %1259 = vmatpush1.msra.mxu0 0.0
    %1260 = vmatprep.subr.mxu0 0.0
    %1261 = vmatpush1.msra.mxu0 0.0
    %1262 = vmatprep.subr.mxu0 0.0
    %1263 = vmatpush1.msra.mxu0 0.0
    %1264 = vmatprep.subr.mxu0 0.0
    %1265 = vmatpush1.msra.mxu0 0.0
    %1266 = vmatprep.subr.mxu0 0.0
    %1267 = vmatpush1.msra.mxu0 0.0
    %1268 = vmatprep.subr.mxu0 0.0
    %1269 = vmatpush1.msra.mxu0 0.0
    %1270 = vmatprep.subr.mxu0 0.0
    %1271 = vmatpush1.msra.mxu0 0.0
    %1272 = vmatprep.subr.mxu0 0.0
    %1273 = vmatpush1.msra.mxu0 0.0
    %1274 = vmatprep.mubr.f32.mxu0 0.0
    %1275 = vmatmul.mubr.f32.gmra.mrb[0].mxu0 %v1208
    %v1276 = vpop.f32.mrb[0].mxu0
    %v1277 = vadd.f32 %v197, %v1276
    %v1278 = vpop.f32.mrb[0].mxu0
    %1279 = vdwg.mxu0
    %v1280 = vxor.u32 %v1277, 2147483648
    %v1281 = vmul.f32 %v1280, 1.442695
    %v1282 = vpow.pop %v1281
    %v1283 = vadd.f32 %v1282, 1.0
    %v1284 = vrcp.pop %v1283
    %v1285 = vmul.f32 1.0, %v1284
    %v1286 = vmul.f32 %v1285, 2.0
    %v1287 = vsub.f32 %v1286, 1.0
    %v1288 = vmul.f32 %v1285, %v1076
    %1290 = vrot.lane.b32.xlu0 %v1287, 64
    %v1291 = vpop.permute.xlu0 %1290
    %v1293 = vmul.f32 %v1285, %v1291
    %1295 = vrot.lane.b32.xlu0 %v1293, 32
    %v1296 = vpop.permute.xlu0 %1295
    %v1298 = vadd.f32 %v1288, %v1296
    %v1299 = vtanh.pop %v1298
    %1301 = vrot.lane.b32.xlu0 %v1299, 64
    %v1302 = vpop.permute.xlu0 %1301
    %v1304 = vmul.f32 %v1285, %v1302
    %vm1305 = vcmp.eq.s32.totalorder %v203, 4
    %v1306 = vlaneseq
    %v1307 = vshrl.u32 %v1306, 7
    %v1308 = vsub.s32 0, %v1307
    %v1309 = vrot.slane %v1304, %v1308
    %v1310 = vsel %vm1305, %v1309, %v1088
    %v1311 = vrot.slane %v1195, 4
    %1312 = vrot.lane.b32.xlu0 %v1311, 32
    %v1313 = vpop.permute.xlu0 %1312
    %v1314 = vsel %vm204, %v1313, 0
    %1316 = vmatprep.subr.mxu0 0.0
    %1317 = vmatpush1.msra.mxu0 %v185
    %1318 = vmatprep.subr.mxu0 0.0
    %1319 = vmatpush1.msra.mxu0 %v186
    %1320 = vmatprep.subr.mxu0 0.0
    %1321 = vmatpush1.msra.mxu0 %v187
    %1322 = vmatprep.subr.mxu0 0.0
    %1323 = vmatpush1.msra.mxu0 %v188
    %1324 = vmatprep.subr.mxu0 0.0
    %1325 = vmatpush1.msra.mxu0 0.0
    %1326 = vmatprep.subr.mxu0 0.0
    %1327 = vmatpush1.msra.mxu0 0.0
    %1328 = vmatprep.subr.mxu0 0.0
    %1329 = vmatpush1.msra.mxu0 0.0
    %1330 = vmatprep.subr.mxu0 0.0
    %1331 = vmatpush1.msra.mxu0 0.0
    %1332 = vmatprep.subr.mxu0 0.0
    %1333 = vmatpush1.msra.mxu0 0.0
    %1334 = vmatprep.subr.mxu0 0.0
    %1335 = vmatpush1.msra.mxu0 0.0
    %1336 = vmatprep.subr.mxu0 0.0
    %1337 = vmatpush1.msra.mxu0 0.0
    %1338 = vmatprep.subr.mxu0 0.0
    %1339 = vmatpush1.msra.mxu0 0.0
    %1340 = vmatprep.subr.mxu0 0.0
    %1341 = vmatpush1.msra.mxu0 0.0
    %1342 = vmatprep.subr.mxu0 0.0
    %1343 = vmatpush1.msra.mxu0 0.0
    %1344 = vmatprep.subr.mxu0 0.0
    %1345 = vmatpush1.msra.mxu0 0.0
    %1346 = vmatprep.subr.mxu0 0.0
    %1347 = vmatpush1.msra.mxu0 0.0
    %1348 = vmatprep.subr.mxu0 0.0
    %1349 = vmatpush1.msra.mxu0 0.0
    %1350 = vmatprep.subr.mxu0 0.0
    %1351 = vmatpush1.msra.mxu0 0.0
    %1352 = vmatprep.subr.mxu0 0.0
    %1353 = vmatpush1.msra.mxu0 0.0
    %1354 = vmatprep.subr.mxu0 0.0
    %1355 = vmatpush1.msra.mxu0 0.0
    %1356 = vmatprep.subr.mxu0 0.0
    %1357 = vmatpush1.msra.mxu0 0.0
    %1358 = vmatprep.subr.mxu0 0.0
    %1359 = vmatpush1.msra.mxu0 0.0
    %1360 = vmatprep.subr.mxu0 0.0
    %1361 = vmatpush1.msra.mxu0 0.0
    %1362 = vmatprep.subr.mxu0 0.0
    %1363 = vmatpush1.msra.mxu0 0.0
    %1364 = vmatprep.subr.mxu0 0.0
    %1365 = vmatpush1.msra.mxu0 0.0
    %1366 = vmatprep.subr.mxu0 0.0
    %1367 = vmatpush1.msra.mxu0 0.0
    %1368 = vmatprep.subr.mxu0 0.0
    %1369 = vmatpush1.msra.mxu0 0.0
    %1370 = vmatprep.subr.mxu0 0.0
    %1371 = vmatpush1.msra.mxu0 0.0
    %1372 = vmatprep.subr.mxu0 0.0
    %1373 = vmatpush1.msra.mxu0 0.0
    %1374 = vmatprep.subr.mxu0 0.0
    %1375 = vmatpush1.msra.mxu0 0.0
    %1376 = vmatprep.subr.mxu0 0.0
    %1377 = vmatpush1.msra.mxu0 0.0
    %1378 = vmatprep.subr.mxu0 0.0
    %1379 = vmatpush1.msra.mxu0 0.0
    %1380 = vmatprep.mubr.f32.mxu0 0.0
    %1381 = vmatmul.mubr.f32.gmra.mrb[0].mxu0 %v1314
    %v1382 = vpop.f32.mrb[0].mxu0
    %v1383 = vadd.f32 0.0, %v1382
    %v1384 = vpop.f32.mrb[0].mxu0
    %1385 = vdwg.mxu0
    %v1387 = vrot.slane %v1383, 3
    %v1389 = vadd.f32 %v182, %v1387
    %v1390 = vxor.u32 %v1389, 2147483648
    %v1391 = vmul.f32 %v1390, 1.442695
    %v1392 = vpow.pop %v1391
    %v1393 = vadd.f32 %v1392, 1.0
    %v1394 = vrcp.pop %v1393
    %v1395 = vmul.f32 1.0, %v1394
    %v1396 = vmul.f32 %v1395, 2.0
    %v1397 = vsub.f32 %v1396, 1.0
    %v1399 = vrot.slane %v1189, 7
    %v1401 = vmul.f32 %v1395, %v1399
    %1403 = vrot.lane.b32.xlu0 %v1397, 64
    %v1404 = vpop.permute.xlu0 %1403
    %v1406 = vmul.f32 %v1395, %v1404
    %1408 = vrot.lane.b32.xlu0 %v1406, 32
    %v1409 = vpop.permute.xlu0 %1408
    %v1411 = vadd.f32 %v1401, %v1409
    %v1412 = vtanh.pop %v1411
    %1414 = vrot.lane.b32.xlu0 %v1412, 64
    %v1415 = vpop.permute.xlu0 %1414
    %v1417 = vmul.f32 %v1395, %v1415
    %1419 = vrot.lane.b32.xlu0 %v1417, 32
    %v1420 = vpop.permute.xlu0 %1419
    %v1423 = vrot.slane %v1304, 3
    %1424 = vrot.lane.b32.xlu0 %v1423, 64
    %v1425 = vpop.permute.xlu0 %1424
    %v1427 = vsel %vm204, %v1420, %v1425
    %v1429 = vrot.slane %v1427, 5
    %v1430 = vsel %vm317, %v1429, 0
    %1432 = vmatprep.subr.mxu0 0.0
    %1433 = vmatpush1.msra.mxu0 %v189
    %1434 = vmatprep.subr.mxu0 0.0
    %1435 = vmatpush1.msra.mxu0 %v190
    %1436 = vmatprep.subr.mxu0 0.0
    %1437 = vmatpush1.msra.mxu0 %v191
    %1438 = vmatprep.subr.mxu0 0.0
    %1439 = vmatpush1.msra.mxu0 %v192
    %1440 = vmatprep.subr.mxu0 0.0
    %1441 = vmatpush1.msra.mxu0 %v193
    %1442 = vmatprep.subr.mxu0 0.0
    %1443 = vmatpush1.msra.mxu0 %v194
    %1444 = vmatprep.subr.mxu0 0.0
    %1445 = vmatpush1.msra.mxu0 %v195
    %1446 = vmatprep.subr.mxu0 0.0
    %1447 = vmatpush1.msra.mxu0 %v196
    %1448 = vmatprep.subr.mxu0 0.0
    %1449 = vmatpush1.msra.mxu0 0.0
    %1450 = vmatprep.subr.mxu0 0.0
    %1451 = vmatpush1.msra.mxu0 0.0
    %1452 = vmatprep.subr.mxu0 0.0
    %1453 = vmatpush1.msra.mxu0 0.0
    %1454 = vmatprep.subr.mxu0 0.0
    %1455 = vmatpush1.msra.mxu0 0.0
    %1456 = vmatprep.subr.mxu0 0.0
    %1457 = vmatpush1.msra.mxu0 0.0
    %1458 = vmatprep.subr.mxu0 0.0
    %1459 = vmatpush1.msra.mxu0 0.0
    %1460 = vmatprep.subr.mxu0 0.0
    %1461 = vmatpush1.msra.mxu0 0.0
    %1462 = vmatprep.subr.mxu0 0.0
    %1463 = vmatpush1.msra.mxu0 0.0
    %1464 = vmatprep.subr.mxu0 0.0
    %1465 = vmatpush1.msra.mxu0 0.0
    %1466 = vmatprep.subr.mxu0 0.0
    %1467 = vmatpush1.msra.mxu0 0.0
    %1468 = vmatprep.subr.mxu0 0.0
    %1469 = vmatpush1.msra.mxu0 0.0
    %1470 = vmatprep.subr.mxu0 0.0
    %1471 = vmatpush1.msra.mxu0 0.0
    %1472 = vmatprep.subr.mxu0 0.0
    %1473 = vmatpush1.msra.mxu0 0.0
    %1474 = vmatprep.subr.mxu0 0.0
    %1475 = vmatpush1.msra.mxu0 0.0
    %1476 = vmatprep.subr.mxu0 0.0
    %1477 = vmatpush1.msra.mxu0 0.0
    %1478 = vmatprep.subr.mxu0 0.0
    %1479 = vmatpush1.msra.mxu0 0.0
    %1480 = vmatprep.subr.mxu0 0.0
    %1481 = vmatpush1.msra.mxu0 0.0
    %1482 = vmatprep.subr.mxu0 0.0
    %1483 = vmatpush1.msra.mxu0 0.0
    %1484 = vmatprep.subr.mxu0 0.0
    %1485 = vmatpush1.msra.mxu0 0.0
    %1486 = vmatprep.subr.mxu0 0.0
    %1487 = vmatpush1.msra.mxu0 0.0
    %1488 = vmatprep.subr.mxu0 0.0
    %1489 = vmatpush1.msra.mxu0 0.0
    %1490 = vmatprep.subr.mxu0 0.0
    %1491 = vmatpush1.msra.mxu0 0.0
    %1492 = vmatprep.subr.mxu0 0.0
    %1493 = vmatpush1.msra.mxu0 0.0
    %1494 = vmatprep.subr.mxu0 0.0
    %1495 = vmatpush1.msra.mxu0 0.0
    %1496 = vmatprep.mubr.f32.mxu0 0.0
    %1497 = vmatmul.mubr.f32.gmra.mrb[0].mxu0 %v1430
    %v1498 = vpop.f32.mrb[0].mxu0
    %v1499 = vadd.f32 %v197, %v1498
    %v1500 = vpop.f32.mrb[0].mxu0
    %1501 = vdwg.mxu0
    %v1502 = vxor.u32 %v1499, 2147483648
    %v1503 = vmul.f32 %v1502, 1.442695
    %v1504 = vpow.pop %v1503
    %v1505 = vadd.f32 %v1504, 1.0
    %v1506 = vrcp.pop %v1505
    %v1507 = vmul.f32 1.0, %v1506
    %v1508 = vmul.f32 %v1507, 2.0
    %v1509 = vsub.f32 %v1508, 1.0
    %v1510 = vmul.f32 %v1507, %v1298
    %1512 = vrot.lane.b32.xlu0 %v1509, 64
    %v1513 = vpop.permute.xlu0 %1512
    %v1515 = vmul.f32 %v1507, %v1513
    %1517 = vrot.lane.b32.xlu0 %v1515, 32
    %v1518 = vpop.permute.xlu0 %1517
    %v1520 = vadd.f32 %v1510, %v1518
    %v1521 = vtanh.pop %v1520
    %1523 = vrot.lane.b32.xlu0 %v1521, 64
    %v1524 = vpop.permute.xlu0 %1523
    %v1526 = vmul.f32 %v1507, %v1524
    %vm1527 = vcmp.eq.s32.totalorder %v203, 5
    %v1528 = vlaneseq
    %v1529 = vshrl.u32 %v1528, 7
    %v1530 = vsub.s32 0, %v1529
    %v1531 = vrot.slane %v1526, %v1530
    %v1532 = vsel %vm1527, %v1531, %v1310
    %v1533 = vrot.slane %v1417, 5
    %1534 = vrot.lane.b32.xlu0 %v1533, 32
    %v1535 = vpop.permute.xlu0 %1534
    %v1536 = vsel %vm204, %v1535, 0
    %1538 = vmatprep.subr.mxu0 0.0
    %1539 = vmatpush1.msra.mxu0 %v185
    %1540 = vmatprep.subr.mxu0 0.0
    %1541 = vmatpush1.msra.mxu0 %v186
    %1542 = vmatprep.subr.mxu0 0.0
    %1543 = vmatpush1.msra.mxu0 %v187
    %1544 = vmatprep.subr.mxu0 0.0
    %1545 = vmatpush1.msra.mxu0 %v188
    %1546 = vmatprep.subr.mxu0 0.0
    %1547 = vmatpush1.msra.mxu0 0.0
    %1548 = vmatprep.subr.mxu0 0.0
    %1549 = vmatpush1.msra.mxu0 0.0
    %1550 = vmatprep.subr.mxu0 0.0
    %1551 = vmatpush1.msra.mxu0 0.0
    %1552 = vmatprep.subr.mxu0 0.0
    %1553 = vmatpush1.msra.mxu0 0.0
    %1554 = vmatprep.subr.mxu0 0.0
    %1555 = vmatpush1.msra.mxu0 0.0
    %1556 = vmatprep.subr.mxu0 0.0
    %1557 = vmatpush1.msra.mxu0 0.0
    %1558 = vmatprep.subr.mxu0 0.0
    %1559 = vmatpush1.msra.mxu0 0.0
    %1560 = vmatprep.subr.mxu0 0.0
    %1561 = vmatpush1.msra.mxu0 0.0
    %1562 = vmatprep.subr.mxu0 0.0
    %1563 = vmatpush1.msra.mxu0 0.0
    %1564 = vmatprep.subr.mxu0 0.0
    %1565 = vmatpush1.msra.mxu0 0.0
    %1566 = vmatprep.subr.mxu0 0.0
    %1567 = vmatpush1.msra.mxu0 0.0
    %1568 = vmatprep.subr.mxu0 0.0
    %1569 = vmatpush1.msra.mxu0 0.0
    %1570 = vmatprep.subr.mxu0 0.0
    %1571 = vmatpush1.msra.mxu0 0.0
    %1572 = vmatprep.subr.mxu0 0.0
    %1573 = vmatpush1.msra.mxu0 0.0
    %1574 = vmatprep.subr.mxu0 0.0
    %1575 = vmatpush1.msra.mxu0 0.0
    %1576 = vmatprep.subr.mxu0 0.0
    %1577 = vmatpush1.msra.mxu0 0.0
    %1578 = vmatprep.subr.mxu0 0.0
    %1579 = vmatpush1.msra.mxu0 0.0
    %1580 = vmatprep.subr.mxu0 0.0
    %1581 = vmatpush1.msra.mxu0 0.0
    %1582 = vmatprep.subr.mxu0 0.0
    %1583 = vmatpush1.msra.mxu0 0.0
    %1584 = vmatprep.subr.mxu0 0.0
    %1585 = vmatpush1.msra.mxu0 0.0
    %1586 = vmatprep.subr.mxu0 0.0
    %1587 = vmatpush1.msra.mxu0 0.0
    %1588 = vmatprep.subr.mxu0 0.0
    %1589 = vmatpush1.msra.mxu0 0.0
    %1590 = vmatprep.subr.mxu0 0.0
    %1591 = vmatpush1.msra.mxu0 0.0
    %1592 = vmatprep.subr.mxu0 0.0
    %1593 = vmatpush1.msra.mxu0 0.0
    %1594 = vmatprep.subr.mxu0 0.0
    %1595 = vmatpush1.msra.mxu0 0.0
    %1596 = vmatprep.subr.mxu0 0.0
    %1597 = vmatpush1.msra.mxu0 0.0
    %1598 = vmatprep.subr.mxu0 0.0
    %1599 = vmatpush1.msra.mxu0 0.0
    %1600 = vmatprep.subr.mxu0 0.0
    %1601 = vmatpush1.msra.mxu0 0.0
    %1602 = vmatprep.mubr.f32.mxu0 0.0
    %1603 = vmatmul.mubr.f32.gmra.mrb[0].mxu0 %v1536
    %v1604 = vpop.f32.mrb[0].mxu0
    %v1605 = vadd.f32 0.0, %v1604
    %v1606 = vpop.f32.mrb[0].mxu0
    %1607 = vdwg.mxu0
    %v1609 = vrot.slane %v1605, 2
    %v1611 = vadd.f32 %v182, %v1609
    %v1612 = vxor.u32 %v1611, 2147483648
    %v1613 = vmul.f32 %v1612, 1.442695
    %v1614 = vpow.pop %v1613
    %v1615 = vadd.f32 %v1614, 1.0
    %v1616 = vrcp.pop %v1615
    %v1617 = vmul.f32 1.0, %v1616
    %v1618 = vmul.f32 %v1617, 2.0
    %v1619 = vsub.f32 %v1618, 1.0
    %v1621 = vrot.slane %v1411, 7
    %v1623 = vmul.f32 %v1617, %v1621
    %1625 = vrot.lane.b32.xlu0 %v1619, 64
    %v1626 = vpop.permute.xlu0 %1625
    %v1628 = vmul.f32 %v1617, %v1626
    %1630 = vrot.lane.b32.xlu0 %v1628, 32
    %v1631 = vpop.permute.xlu0 %1630
    %v1633 = vadd.f32 %v1623, %v1631
    %v1634 = vtanh.pop %v1633
    %1636 = vrot.lane.b32.xlu0 %v1634, 64
    %v1637 = vpop.permute.xlu0 %1636
    %v1639 = vmul.f32 %v1617, %v1637
    %1641 = vrot.lane.b32.xlu0 %v1639, 32
    %v1642 = vpop.permute.xlu0 %1641
    %v1645 = vrot.slane %v1526, 2
    %1646 = vrot.lane.b32.xlu0 %v1645, 64
    %v1647 = vpop.permute.xlu0 %1646
    %v1649 = vsel %vm204, %v1642, %v1647
    %v1651 = vrot.slane %v1649, 6
    %v1652 = vsel %vm317, %v1651, 0
    %1654 = vmatprep.subr.mxu0 0.0
    %1655 = vmatpush1.msra.mxu0 %v189
    %1656 = vmatprep.subr.mxu0 0.0
    %1657 = vmatpush1.msra.mxu0 %v190
    %1658 = vmatprep.subr.mxu0 0.0
    %1659 = vmatpush1.msra.mxu0 %v191
    %1660 = vmatprep.subr.mxu0 0.0
    %1661 = vmatpush1.msra.mxu0 %v192
    %1662 = vmatprep.subr.mxu0 0.0
    %1663 = vmatpush1.msra.mxu0 %v193
    %1664 = vmatprep.subr.mxu0 0.0
    %1665 = vmatpush1.msra.mxu0 %v194
    %1666 = vmatprep.subr.mxu0 0.0
    %1667 = vmatpush1.msra.mxu0 %v195
    %1668 = vmatprep.subr.mxu0 0.0
    %1669 = vmatpush1.msra.mxu0 %v196
    %1670 = vmatprep.subr.mxu0 0.0
    %1671 = vmatpush1.msra.mxu0 0.0
    %1672 = vmatprep.subr.mxu0 0.0
    %1673 = vmatpush1.msra.mxu0 0.0
    %1674 = vmatprep.subr.mxu0 0.0
    %1675 = vmatpush1.msra.mxu0 0.0
    %1676 = vmatprep.subr.mxu0 0.0
    %1677 = vmatpush1.msra.mxu0 0.0
    %1678 = vmatprep.subr.mxu0 0.0
    %1679 = vmatpush1.msra.mxu0 0.0
    %1680 = vmatprep.subr.mxu0 0.0
    %1681 = vmatpush1.msra.mxu0 0.0
    %1682 = vmatprep.subr.mxu0 0.0
    %1683 = vmatpush1.msra.mxu0 0.0
    %1684 = vmatprep.subr.mxu0 0.0
    %1685 = vmatpush1.msra.mxu0 0.0
    %1686 = vmatprep.subr.mxu0 0.0
    %1687 = vmatpush1.msra.mxu0 0.0
    %1688 = vmatprep.subr.mxu0 0.0
    %1689 = vmatpush1.msra.mxu0 0.0
    %1690 = vmatprep.subr.mxu0 0.0
    %1691 = vmatpush1.msra.mxu0 0.0
    %1692 = vmatprep.subr.mxu0 0.0
    %1693 = vmatpush1.msra.mxu0 0.0
    %1694 = vmatprep.subr.mxu0 0.0
    %1695 = vmatpush1.msra.mxu0 0.0
    %1696 = vmatprep.subr.mxu0 0.0
    %1697 = vmatpush1.msra.mxu0 0.0
    %1698 = vmatprep.subr.mxu0 0.0
    %1699 = vmatpush1.msra.mxu0 0.0
    %1700 = vmatprep.subr.mxu0 0.0
    %1701 = vmatpush1.msra.mxu0 0.0
    %1702 = vmatprep.subr.mxu0 0.0
    %1703 = vmatpush1.msra.mxu0 0.0
    %1704 = vmatprep.subr.mxu0 0.0
    %1705 = vmatpush1.msra.mxu0 0.0
    %1706 = vmatprep.subr.mxu0 0.0
    %1707 = vmatpush1.msra.mxu0 0.0
    %1708 = vmatprep.subr.mxu0 0.0
    %1709 = vmatpush1.msra.mxu0 0.0
    %1710 = vmatprep.subr.mxu0 0.0
    %1711 = vmatpush1.msra.mxu0 0.0
    %1712 = vmatprep.subr.mxu0 0.0
    %1713 = vmatpush1.msra.mxu0 0.0
    %1714 = vmatprep.subr.mxu0 0.0
    %1715 = vmatpush1.msra.mxu0 0.0
    %1716 = vmatprep.subr.mxu0 0.0
    %1717 = vmatpush1.msra.mxu0 0.0
    %1718 = vmatprep.mubr.f32.mxu0 0.0
    %1719 = vmatmul.mubr.f32.gmra.mrb[0].mxu0 %v1652
    %v1720 = vpop.f32.mrb[0].mxu0
    %v1721 = vadd.f32 %v197, %v1720
    %v1722 = vpop.f32.mrb[0].mxu0
    %1723 = vdwg.mxu0
    %v1724 = vxor.u32 %v1721, 2147483648
    %v1725 = vmul.f32 %v1724, 1.442695
    %v1726 = vpow.pop %v1725
    %v1727 = vadd.f32 %v1726, 1.0
    %v1728 = vrcp.pop %v1727
    %v1729 = vmul.f32 1.0, %v1728
    %v1730 = vmul.f32 %v1729, 2.0
    %v1731 = vsub.f32 %v1730, 1.0
    %v1732 = vmul.f32 %v1729, %v1520
    %1734 = vrot.lane.b32.xlu0 %v1731, 64
    %v1735 = vpop.permute.xlu0 %1734
    %v1737 = vmul.f32 %v1729, %v1735
    %1739 = vrot.lane.b32.xlu0 %v1737, 32
    %v1740 = vpop.permute.xlu0 %1739
    %v1742 = vadd.f32 %v1732, %v1740
    %v1743 = vtanh.pop %v1742
    %1745 = vrot.lane.b32.xlu0 %v1743, 64
    %v1746 = vpop.permute.xlu0 %1745
    %v1748 = vmul.f32 %v1729, %v1746
    %vm1749 = vcmp.eq.s32.totalorder %v203, 6
    %v1750 = vlaneseq
    %v1751 = vshrl.u32 %v1750, 7
    %v1752 = vsub.s32 0, %v1751
    %v1753 = vrot.slane %v1748, %v1752
    %v1754 = vsel %vm1749, %v1753, %v1532
    %v1755 = vrot.slane %v1639, 6
    %1756 = vrot.lane.b32.xlu0 %v1755, 32
    %v1757 = vpop.permute.xlu0 %1756
    %v1758 = vsel %vm204, %v1757, 0
    %1760 = vmatprep.subr.mxu0 0.0
    %1761 = vmatpush1.msra.mxu0 %v185
    %1762 = vmatprep.subr.mxu0 0.0
    %1763 = vmatpush1.msra.mxu0 %v186
    %1764 = vmatprep.subr.mxu0 0.0
    %1765 = vmatpush1.msra.mxu0 %v187
    %1766 = vmatprep.subr.mxu0 0.0
    %1767 = vmatpush1.msra.mxu0 %v188
    %1768 = vmatprep.subr.mxu0 0.0
    %1769 = vmatpush1.msra.mxu0 0.0
    %1770 = vmatprep.subr.mxu0 0.0
    %1771 = vmatpush1.msra.mxu0 0.0
    %1772 = vmatprep.subr.mxu0 0.0
    %1773 = vmatpush1.msra.mxu0 0.0
    %1774 = vmatprep.subr.mxu0 0.0
    %1775 = vmatpush1.msra.mxu0 0.0
    %1776 = vmatprep.subr.mxu0 0.0
    %1777 = vmatpush1.msra.mxu0 0.0
    %1778 = vmatprep.subr.mxu0 0.0
    %1779 = vmatpush1.msra.mxu0 0.0
    %1780 = vmatprep.subr.mxu0 0.0
    %1781 = vmatpush1.msra.mxu0 0.0
    %1782 = vmatprep.subr.mxu0 0.0
    %1783 = vmatpush1.msra.mxu0 0.0
    %1784 = vmatprep.subr.mxu0 0.0
    %1785 = vmatpush1.msra.mxu0 0.0
    %1786 = vmatprep.subr.mxu0 0.0
    %1787 = vmatpush1.msra.mxu0 0.0
    %1788 = vmatprep.subr.mxu0 0.0
    %1789 = vmatpush1.msra.mxu0 0.0
    %1790 = vmatprep.subr.mxu0 0.0
    %1791 = vmatpush1.msra.mxu0 0.0
    %1792 = vmatprep.subr.mxu0 0.0
    %1793 = vmatpush1.msra.mxu0 0.0
    %1794 = vmatprep.subr.mxu0 0.0
    %1795 = vmatpush1.msra.mxu0 0.0
    %1796 = vmatprep.subr.mxu0 0.0
    %1797 = vmatpush1.msra.mxu0 0.0
    %1798 = vmatprep.subr.mxu0 0.0
    %1799 = vmatpush1.msra.mxu0 0.0
    %1800 = vmatprep.subr.mxu0 0.0
    %1801 = vmatpush1.msra.mxu0 0.0
    %1802 = vmatprep.subr.mxu0 0.0
    %1803 = vmatpush1.msra.mxu0 0.0
    %1804 = vmatprep.subr.mxu0 0.0
    %1805 = vmatpush1.msra.mxu0 0.0
    %1806 = vmatprep.subr.mxu0 0.0
    %1807 = vmatpush1.msra.mxu0 0.0
    %1808 = vmatprep.subr.mxu0 0.0
    %1809 = vmatpush1.msra.mxu0 0.0
    %1810 = vmatprep.subr.mxu0 0.0
    %1811 = vmatpush1.msra.mxu0 0.0
    %1812 = vmatprep.subr.mxu0 0.0
    %1813 = vmatpush1.msra.mxu0 0.0
    %1814 = vmatprep.subr.mxu0 0.0
    %1815 = vmatpush1.msra.mxu0 0.0
    %1816 = vmatprep.subr.mxu0 0.0
    %1817 = vmatpush1.msra.mxu0 0.0
    %1818 = vmatprep.subr.mxu0 0.0
    %1819 = vmatpush1.msra.mxu0 0.0
    %1820 = vmatprep.subr.mxu0 0.0
    %1821 = vmatpush1.msra.mxu0 0.0
    %1822 = vmatprep.subr.mxu0 0.0
    %1823 = vmatpush1.msra.mxu0 0.0
    %1824 = vmatprep.mubr.f32.mxu0 0.0
    %1825 = vmatmul.mubr.f32.gmra.mrb[0].mxu0 %v1758
    %v1826 = vpop.f32.mrb[0].mxu0
    %v1827 = vadd.f32 0.0, %v1826
    %v1828 = vpop.f32.mrb[0].mxu0
    %1829 = vdwg.mxu0
    %v1831 = vrot.slane %v1827, 1
    %v1833 = vadd.f32 %v182, %v1831
    %v1834 = vxor.u32 %v1833, 2147483648
    %v1835 = vmul.f32 %v1834, 1.442695
    %v1836 = vpow.pop %v1835
    %v1837 = vadd.f32 %v1836, 1.0
    %v1838 = vrcp.pop %v1837
    %v1839 = vmul.f32 1.0, %v1838
    %v1840 = vmul.f32 %v1839, 2.0
    %v1841 = vsub.f32 %v1840, 1.0
    %v1843 = vrot.slane %v1633, 7
    %v1845 = vmul.f32 %v1839, %v1843
    %1847 = vrot.lane.b32.xlu0 %v1841, 64
    %v1848 = vpop.permute.xlu0 %1847
    %v1850 = vmul.f32 %v1839, %v1848
    %1852 = vrot.lane.b32.xlu0 %v1850, 32
    %v1853 = vpop.permute.xlu0 %1852
    %v1855 = vadd.f32 %v1845, %v1853
    %v1856 = vtanh.pop %v1855
    %1858 = vrot.lane.b32.xlu0 %v1856, 64
    %v1859 = vpop.permute.xlu0 %1858
    %v1861 = vmul.f32 %v1839, %v1859
    %1863 = vrot.lane.b32.xlu0 %v1861, 32
    %v1864 = vpop.permute.xlu0 %1863
    %v1867 = vrot.slane %v1748, 1
    %1868 = vrot.lane.b32.xlu0 %v1867, 64
    %v1869 = vpop.permute.xlu0 %1868
    %v1871 = vsel %vm204, %v1864, %v1869
    %v1873 = vrot.slane %v1871, 7
    %v1874 = vsel %vm317, %v1873, 0
    %1876 = vmatprep.subr.mxu0 0.0
    %1877 = vmatpush1.msra.mxu0 %v189
    %1878 = vmatprep.subr.mxu0 0.0
    %1879 = vmatpush1.msra.mxu0 %v190
    %1880 = vmatprep.subr.mxu0 0.0
    %1881 = vmatpush1.msra.mxu0 %v191
    %1882 = vmatprep.subr.mxu0 0.0
    %1883 = vmatpush1.msra.mxu0 %v192
    %1884 = vmatprep.subr.mxu0 0.0
    %1885 = vmatpush1.msra.mxu0 %v193
    %1886 = vmatprep.subr.mxu0 0.0
    %1887 = vmatpush1.msra.mxu0 %v194
    %1888 = vmatprep.subr.mxu0 0.0
    %1889 = vmatpush1.msra.mxu0 %v195
    %1890 = vmatprep.subr.mxu0 0.0
    %1891 = vmatpush1.msra.mxu0 %v196
    %1892 = vmatprep.subr.mxu0 0.0
    %1893 = vmatpush1.msra.mxu0 0.0
    %1894 = vmatprep.subr.mxu0 0.0
    %1895 = vmatpush1.msra.mxu0 0.0
    %1896 = vmatprep.subr.mxu0 0.0
    %1897 = vmatpush1.msra.mxu0 0.0
    %1898 = vmatprep.subr.mxu0 0.0
    %1899 = vmatpush1.msra.mxu0 0.0
    %1900 = vmatprep.subr.mxu0 0.0
    %1901 = vmatpush1.msra.mxu0 0.0
    %1902 = vmatprep.subr.mxu0 0.0
    %1903 = vmatpush1.msra.mxu0 0.0
    %1904 = vmatprep.subr.mxu0 0.0
    %1905 = vmatpush1.msra.mxu0 0.0
    %1906 = vmatprep.subr.mxu0 0.0
    %1907 = vmatpush1.msra.mxu0 0.0
    %1908 = vmatprep.subr.mxu0 0.0
    %1909 = vmatpush1.msra.mxu0 0.0
    %1910 = vmatprep.subr.mxu0 0.0
    %1911 = vmatpush1.msra.mxu0 0.0
    %1912 = vmatprep.subr.mxu0 0.0
    %1913 = vmatpush1.msra.mxu0 0.0
    %1914 = vmatprep.subr.mxu0 0.0
    %1915 = vmatpush1.msra.mxu0 0.0
    %1916 = vmatprep.subr.mxu0 0.0
    %1917 = vmatpush1.msra.mxu0 0.0
    %1918 = vmatprep.subr.mxu0 0.0
    %1919 = vmatpush1.msra.mxu0 0.0
    %1920 = vmatprep.subr.mxu0 0.0
    %1921 = vmatpush1.msra.mxu0 0.0
    %1922 = vmatprep.subr.mxu0 0.0
    %1923 = vmatpush1.msra.mxu0 0.0
    %1924 = vmatprep.subr.mxu0 0.0
    %1925 = vmatpush1.msra.mxu0 0.0
    %1926 = vmatprep.subr.mxu0 0.0
    %1927 = vmatpush1.msra.mxu0 0.0
    %1928 = vmatprep.subr.mxu0 0.0
    %1929 = vmatpush1.msra.mxu0 0.0
    %1930 = vmatprep.subr.mxu0 0.0
    %1931 = vmatpush1.msra.mxu0 0.0
    %1932 = vmatprep.subr.mxu0 0.0
    %1933 = vmatpush1.msra.mxu0 0.0
    %1934 = vmatprep.subr.mxu0 0.0
    %1935 = vmatpush1.msra.mxu0 0.0
    %1936 = vmatprep.subr.mxu0 0.0
    %1937 = vmatpush1.msra.mxu0 0.0
    %1938 = vmatprep.subr.mxu0 0.0
    %1939 = vmatpush1.msra.mxu0 0.0
    %1940 = vmatprep.mubr.f32.mxu0 0.0
    %1941 = vmatmul.mubr.f32.gmra.mrb[0].mxu0 %v1874
    %v1942 = vpop.f32.mrb[0].mxu0
    %v1943 = vadd.f32 %v197, %v1942
    %v1944 = vpop.f32.mrb[0].mxu0
    %1945 = vdwg.mxu0
    %v1946 = vxor.u32 %v1943, 2147483648
    %v1947 = vmul.f32 %v1946, 1.442695
    %v1948 = vpow.pop %v1947
    %v1949 = vadd.f32 %v1948, 1.0
    %v1950 = vrcp.pop %v1949
    %v1951 = vmul.f32 1.0, %v1950
    %v1952 = vmul.f32 %v1951, 2.0
    %v1953 = vsub.f32 %v1952, 1.0
    %v1954 = vmul.f32 %v1951, %v1742
    %1956 = vrot.lane.b32.xlu0 %v1953, 64
    %v1957 = vpop.permute.xlu0 %1956
    %v1959 = vmul.f32 %v1951, %v1957
    %1961 = vrot.lane.b32.xlu0 %v1959, 32
    %v1962 = vpop.permute.xlu0 %1961
    %v1964 = vadd.f32 %v1954, %v1962
    %v1965 = vtanh.pop %v1964
    %1967 = vrot.lane.b32.xlu0 %v1965, 64
    %v1968 = vpop.permute.xlu0 %1967
    %v1970 = vmul.f32 %v1951, %v1968
    %vm1971 = vcmp.eq.s32.totalorder %v203, 7
    %v1972 = vlaneseq
    %v1973 = vshrl.u32 %v1972, 7
    %v1974 = vsub.s32 0, %v1973
    %v1975 = vrot.slane %v1970, %v1974
    %v1976 = vsel %vm1971, %v1975, %v1754
    %v1977 = vlaneseq
    %v1978 = vshrl.u32 %v1977, 7
    %v1979 = vsub.s32 7, %v1978
    %v1980 = vrot.slane %v1861, %v1979
    %v1981 = vsel %vm420, %v1980, %v1975
    %1983 = vrot.lane.b32.xlu0 %v1981, 32
    %v1984 = vpop.permute.xlu0 %1983
    %vm1986 = vcmask 254976
    %1987 = vst.msk [vmem:[#allocation11] sm:$0x3] %vm1986, %v1984
    %v1988 = vlaneseq
    %v1989 = vshrl.u32 %v1988, 7
    %v1990 = vsub.s32 7, %v1989
    %v1991 = vrot.slane %v1855, %v1990
    %v1992 = vlaneseq
    %v1993 = vshrl.u32 %v1992, 7
    %v1994 = vsub.s32 0, %v1993
    %v1995 = vrot.slane %v1964, %v1994
    %v1996 = vsel %vm420, %v1991, %v1995
    %1998 = vrot.lane.b32.xlu0 %v1996, 96
    %v1999 = vpop.permute.xlu0 %1998
    %2001 = vst.msk [vmem:[#allocation12] sm:$0x3] %vm1986, %v1999
    %v2002 = vld [vmem:[%s8] sm:$0xff]
    %v2003 = vld [vmem:[%s8 + $0x8] sm:$0xff]
    %v2004 = vld [vmem:[%s8 + $0x10] sm:$0xff]
    %v2005 = vld [vmem:[%s8 + $0x18] sm:$0xff]
    %v2006 = vld [vmem:[%s9] sm:$0x1]
    %v2008 = vlaneseq
    %v2009 = vshrl.u32 %v2008, 7
    %v2010 = vsub.s32 0, %v2009
    %v2011 = vrot.slane %v2006, %v2010
    %2014 = vrot.lane.b32.xlu0 %v1976, 32
    %v2015 = vpop.permute.xlu0 %2014
    %v2016 = vsel %vm204, %v2015, 0
    %2018 = vmatprep.subr.mxu0 0.0
    %2019 = vmatpush1.msra.mxu0 %v2002
    %2020 = vmatprep.subr.mxu0 0.0
    %2021 = vmatpush1.msra.mxu0 %v2003
    %2022 = vmatprep.subr.mxu0 0.0
    %2023 = vmatpush1.msra.mxu0 %v2004
    %2024 = vmatprep.subr.mxu0 0.0
    %2025 = vmatpush1.msra.mxu0 %v2005
    %2026 = vmatprep.subr.mxu0 0.0
    %2027 = vmatpush1.msra.mxu0 0.0
    %2028 = vmatprep.subr.mxu0 0.0
    %2029 = vmatpush1.msra.mxu0 0.0
    %2030 = vmatprep.subr.mxu0 0.0
    %2031 = vmatpush1.msra.mxu0 0.0
    %2032 = vmatprep.subr.mxu0 0.0
    %2033 = vmatpush1.msra.mxu0 0.0
    %2034 = vmatprep.subr.mxu0 0.0
    %2035 = vmatpush1.msra.mxu0 0.0
    %2036 = vmatprep.subr.mxu0 0.0
    %2037 = vmatpush1.msra.mxu0 0.0
    %2038 = vmatprep.subr.mxu0 0.0
    %2039 = vmatpush1.msra.mxu0 0.0
    %2040 = vmatprep.subr.mxu0 0.0
    %2041 = vmatpush1.msra.mxu0 0.0
    %2042 = vmatprep.subr.mxu0 0.0
    %2043 = vmatpush1.msra.mxu0 0.0
    %2044 = vmatprep.subr.mxu0 0.0
    %2045 = vmatpush1.msra.mxu0 0.0
    %2046 = vmatprep.subr.mxu0 0.0
    %2047 = vmatpush1.msra.mxu0 0.0
    %2048 = vmatprep.subr.mxu0 0.0
    %2049 = vmatpush1.msra.mxu0 0.0
    %2050 = vmatprep.subr.mxu0 0.0
    %2051 = vmatpush1.msra.mxu0 0.0
    %2052 = vmatprep.subr.mxu0 0.0
    %2053 = vmatpush1.msra.mxu0 0.0
    %2054 = vmatprep.subr.mxu0 0.0
    %2055 = vmatpush1.msra.mxu0 0.0
    %2056 = vmatprep.subr.mxu0 0.0
    %2057 = vmatpush1.msra.mxu0 0.0
    %2058 = vmatprep.subr.mxu0 0.0
    %2059 = vmatpush1.msra.mxu0 0.0
    %2060 = vmatprep.subr.mxu0 0.0
    %2061 = vmatpush1.msra.mxu0 0.0
    %2062 = vmatprep.subr.mxu0 0.0
    %2063 = vmatpush1.msra.mxu0 0.0
    %2064 = vmatprep.subr.mxu0 0.0
    %2065 = vmatpush1.msra.mxu0 0.0
    %2066 = vmatprep.subr.mxu0 0.0
    %2067 = vmatpush1.msra.mxu0 0.0
    %2068 = vmatprep.subr.mxu0 0.0
    %2069 = vmatpush1.msra.mxu0 0.0
    %2070 = vmatprep.subr.mxu0 0.0
    %2071 = vmatpush1.msra.mxu0 0.0
    %2072 = vmatprep.subr.mxu0 0.0
    %2073 = vmatpush1.msra.mxu0 0.0
    %2074 = vmatprep.subr.mxu0 0.0
    %2075 = vmatpush1.msra.mxu0 0.0
    %2076 = vmatprep.subr.mxu0 0.0
    %2077 = vmatpush1.msra.mxu0 0.0
    %2078 = vmatprep.subr.mxu0 0.0
    %2079 = vmatpush1.msra.mxu0 0.0
    %2080 = vmatprep.subr.mxu0 0.0
    %2081 = vmatpush1.msra.mxu0 0.0
    %2082 = vmatprep.mubr.f32.mxu0 0.0
    %2083 = vmatmul.mubr.f32.gmra.mrb[0].mxu0 %v2016
    %v2084 = vpop.f32.mrb[0].mxu0
    %v2085 = vadd.f32 %v2011, %v2084
    %v2086 = vpop.f32.mrb[0].mxu0
    %2087 = vdwg.mxu0
    %v2088 = vxor.u32 %v2085, 2147483648
    %v2089 = vmul.f32 %v2088, 1.442695
    %v2090 = vpow.pop %v2089
    %v2091 = vadd.f32 %v2090, 1.0
    %v2092 = vrcp.pop %v2091
    %v2093 = vmul.f32 1.0, %v2092
    %2094 = vst [vmem:[%s10] sm:$0xff] %v2093
    // Predicated region
    $region62: #{single_lstm_forward.1} parent=1 // pred_check
      _
    $region63: #{single_lstm_forward.1} parent=1 // pred_check_branch
      %2096 = sbr.rel (0) target = $region65
    $region64: #{single_lstm_forward.1} parent=1 // pred_region
      _
    $region65: #{single_lstm_forward.1} parent=1 // pred_fallthru
      _
    // Predicated region
    $region66: #{single_lstm_forward.1} parent=1 // pred_check
      _
    $region67: #{single_lstm_forward.1} parent=1 // pred_check_branch
      %2098 = sbr.rel (0) target = $region69
    $region68: #{single_lstm_forward.1} parent=1 // pred_region
      %s2100 = ssub.s32 32, 32
      %2101 = vsyncadd [#allocation4], %s2100
      %s2103 = sshll.u32 [#allocation11], 4
      %s2104 = int_to_ptr.vmem [resolvable:$true] %s2103
      %2106 = dma.vmem_to_hbm [thread:$0]  %s2104, 32, %s11, [#allocation4]
    $region69: #{single_lstm_forward.1} parent=1 // pred_fallthru
      _
    // Predicated region
    $region70: #{single_lstm_forward.1} parent=1 // pred_check
      _
    $region71: #{single_lstm_forward.1} parent=1 // pred_check_branch
      %2108 = sbr.rel (0) target = $region73
    $region72: #{single_lstm_forward.1} parent=1 // pred_region
      %s2110 = ssub.s32 32, 32
      %2111 = vsyncadd [#allocation13], %s2110
      %s2113 = sshll.u32 [#allocation12], 4
      %s2114 = int_to_ptr.vmem [resolvable:$true] %s2113
      %2116 = dma.vmem_to_hbm [thread:$0]  %s2114, 32, %s12, [#allocation13]
    $region73: #{single_lstm_forward.1} parent=1 // pred_fallthru
      _
    // Predicated region
    $region74: #{single_lstm_forward.1} parent=1 // pred_check
      _
    $region75: #{single_lstm_forward.1} parent=1 // pred_check_branch
      %2118 = sbr.rel (0) target = $region77
    $region76: #{single_lstm_forward.1} parent=1 // pred_region
      _
    $region77: #{single_lstm_forward.1} parent=1 // pred_fallthru
      _
    // Predicated region
    $region78: #{single_lstm_forward.1} parent=1 // pred_check
      _
    $region79: #{single_lstm_forward.1} parent=1 // pred_check_branch
      %2120 = sbr.rel (0) target = $region81
    $region80: #{single_lstm_forward.1} parent=1 // pred_region
      %2121 = dma.done [#allocation4], 32
    $region81: #{single_lstm_forward.1} parent=1 // pred_fallthru
      _
    // Predicated region
    $region82: #{single_lstm_forward.1} parent=1 // pred_check
      _
    $region83: #{single_lstm_forward.1} parent=1 // pred_check_branch
      %2123 = sbr.rel (0) target = $region85
    $region84: #{single_lstm_forward.1} parent=1 // pred_region
      %2124 = dma.done [#allocation13], 32
    $region85: #{single_lstm_forward.1} parent=1 // pred_fallthru
      _
    %2125 = vsyncpa [#allocation3], 1
    %2126 = vsyncpa [#allocation6], 1
    %2127 = vsyncpa [#allocation9], 1
    %2128 = vsyncpa [#allocation4], 1
    %2129 = vsyncpa [#allocation13], 1

</llo_original>
